<compile_context>
chip_gen: v5e
topology: v5e:2x2
jax: 0.10.0
libtpu: 0.0.40
codegen_flags: <defaults>
</compile_context>

<pallas_src>
import numpy as np
import jax
import jax.numpy as jnp
from jax.experimental import pallas as pl
from jax.experimental.pallas import tpu as pltpu

EPS = 1e-5
_TM_CAP = 2048   # large row tiles amortize the ~0.35us per-grid-step overhead


def _round_up(v, m):
    return (v + m - 1) // m * m


def _update_node_impl(h_V, batch_id, params, *, num_graphs):
    N, H = h_V.shape
    Dh = 4 * H
    out_dtype = h_V.dtype
    f32 = jnp.float32

    B = num_graphs
    Bp = _round_up(B, 8)

    if N <= _TM_CAP:
        TM = N            # single tile: every block equals the full array dims
        nt = 1
    else:
        TM = _TM_CAP      # multiple of (8, 128) -> legal row tile and lane tile
        nt = pl.cdiv(N, TM)

    inv_n = 1.0 / N

    bid32 = batch_id.astype(jnp.int32)
    bid_lane = bid32.reshape(1, N)      # lane-major  (pass 2: build one-hot^T)
    bid_sub = bid32.reshape(N, 1)       # sublane-major (pass 3: gate gather)

    # --- parameters (tiny; big MLP weights in bf16 for the MXU) -------------
    g1 = params["bn1_g"].astype(f32).reshape(1, H)
    be1 = params["bn1_b"].astype(f32).reshape(1, H)
    g2 = params["bn2_g"].astype(f32).reshape(1, H)
    be2 = params["bn2_b"].astype(f32).reshape(1, H)
    w1 = params["w1"].astype(jnp.bfloat16)                  # (H, 4H)
    b1 = params["b1"].astype(f32).reshape(1, Dh)
    w2 = params["w2"].astype(jnp.bfloat16)                  # (4H, H)
    b2 = params["b2"].astype(f32).reshape(1, H)
    wg1 = params["wg1"].astype(f32)
    bg1 = params["bg1"].astype(f32).reshape(1, H)
    wg2 = params["wg2"].astype(f32)
    bg2 = params["bg2"].astype(f32).reshape(1, H)
    wg3 = params["wg3"].astype(f32)
    bg3 = params["bg3"].astype(f32).reshape(1, H)

    # Shared BN1-apply + MLP (used by pass 2 and recomputed in pass 3).
    def _bn1_mlp(xt, xs, xq, g1v, be1v, w1v, b1v, w2v, b2v):
        mu1 = xs * inv_n
        var1 = xq * inv_n - mu1 * mu1
        scale1 = g1v * jax.lax.rsqrt(var1 + EPS)
        shift1 = be1v - mu1 * scale1
        xn = xt * scale1 + shift1
        t = jnp.dot(xn.astype(jnp.bfloat16), w1v,
                    preferred_element_type=jnp.float32) + b1v
        t = jnp.maximum(t, 0.0)
        y = jnp.dot(t.astype(jnp.bfloat16), w2v,
                    preferred_element_type=jnp.float32) + b2v
        return y

    # ----- pass 1: streaming BN1 statistics ---------------------------------
    def stats_kernel(x_ref, s_ref, q_ref):
        i = pl.program_id(0)

        @pl.when(i == 0)
        def _():
            s_ref[...] = jnp.zeros_like(s_ref)
            q_ref[...] = jnp.zeros_like(q_ref)

        row = i * TM + jax.lax.broadcasted_iota(jnp.int32, (TM, 1), 0)
        xt = jnp.where(row < N, x_ref[...].astype(jnp.float32), 0.0)
        s_ref[...] += jnp.sum(xt, axis=0, keepdims=True)
        q_ref[...] += jnp.sum(xt * xt, axis=0, keepdims=True)

    xsum, xsq = pl.pallas_call(
        stats_kernel,
        grid=(nt,),
        in_specs=[pl.BlockSpec((TM, H), lambda i: (i, 0))],
        out_specs=(pl.BlockSpec((1, H), lambda i: (0, 0)),
                   pl.BlockSpec((1, H), lambda i: (0, 0))),
        out_shape=(jax.ShapeDtypeStruct((1, H), f32),
                   jax.ShapeDtypeStruct((1, H), f32)),
        compiler_params=pltpu.CompilerParams(
            dimension_semantics=("arbitrary",),
            vmem_limit_bytes=16 * 1024 * 1024),
    )(h_V)

    # ----- pass 2: BN1 -> MLP (bf16 MXU) -> BN2 stats + segment sums + counts
    def reduce_kernel(x_ref, bidl_ref, xs_ref, xq_ref, g1_ref, be1_ref,
                      w1_ref, b1_ref, w2_ref, b2_ref,
                      ys_ref, yq_ref, sx_ref, sy_ref, cnt_ref):
        i = pl.program_id(0)

        @pl.when(i == 0)
        def _():
            ys_ref[...] = jnp.zeros_like(ys_ref)
            yq_ref[...] = jnp.zeros_like(yq_ref)
            sx_ref[...] = jnp.zeros_like(sx_ref)
            sy_ref[...] = jnp.zeros_like(sy_ref)
            cnt_ref[...] = jnp.zeros_like(cnt_ref)

        row = i * TM + jax.lax.broadcasted_iota(jnp.int32, (TM, 1), 0)
        valid = row < N                                           # [TM, 1]
        xt = jnp.where(valid, x_ref[...].astype(jnp.float32), 0.0)

        y = _bn1_mlp(xt, xs_ref[...], xq_ref[...], g1_ref[...], be1_ref[...],
                     w1_ref[...], b1_ref[...], w2_ref[...], b2_ref[...])
        ym = jnp.where(valid, y, 0.0)

        ys_ref[...] += jnp.sum(ym, axis=0, keepdims=True)
        yq_ref[...] += jnp.sum(ym * ym, axis=0, keepdims=True)

        # per-graph segment sums / counts via a tile-local masked one-hot [Bp, TM]
        col = i * TM + jax.lax.broadcasted_iota(jnp.int32, (1, TM), 1)
        onehot_t = jnp.where(
            (jax.lax.broadcasted_iota(jnp.int32, (Bp, TM), 0) == bidl_ref[...])
            & (col < N), 1.0, 0.0)
        sx_ref[...] += jnp.dot(onehot_t, xt, preferred_element_type=jnp.float32)
        sy_ref[...] += jnp.dot(onehot_t, ym, preferred_element_type=jnp.float32)
        cnt_ref[...] += jnp.sum(onehot_t, axis=1, keepdims=True)

    itemsize = jnp.dtype(h_V.dtype).itemsize
    reduce_cost = pl.CostEstimate(
        flops=4 * N * H * Dh + 4 * N * Bp * H,
        transcendentals=nt * H,
        bytes_accessed=N * H * itemsize + N * 4 + 2 * H * Dh * 2 + 4 * Bp * H * 4,
    )

    ysum, ysq, segx, segy, cnt = pl.pallas_call(
        reduce_kernel,
        grid=(nt,),
        in_specs=[
            pl.BlockSpec((TM, H), lambda i: (i, 0)),   # x tile (native dtype)
            pl.BlockSpec((1, TM), lambda i: (0, i)),   # batch_id (lane-major)
            pl.BlockSpec((1, H), lambda i: (0, 0)),    # BN1 sum
            pl.BlockSpec((1, H), lambda i: (0, 0)),    # BN1 sumsq
            pl.BlockSpec((1, H), lambda i: (0, 0)),    # BN1 gamma
            pl.BlockSpec((1, H), lambda i: (0, 0)),    # BN1 beta
            pl.BlockSpec((H, Dh), lambda i: (0, 0)),   # W1 (bf16)
            pl.BlockSpec((1, Dh), lambda i: (0, 0)),   # b1
            pl.BlockSpec((Dh, H), lambda i: (0, 0)),   # W2 (bf16)
            pl.BlockSpec((1, H), lambda i: (0, 0)),    # b2
        ],
        out_specs=(
            pl.BlockSpec((1, H), lambda i: (0, 0)),    # BN2 sum
            pl.BlockSpec((1, H), lambda i: (0, 0)),    # BN2 sumsq
            pl.BlockSpec((Bp, H), lambda i: (0, 0)),   # per-graph sum of x
            pl.BlockSpec((Bp, H), lambda i: (0, 0)),   # per-graph sum of y
            pl.BlockSpec((Bp, 1), lambda i: (0, 0)),   # per-graph count
        ),
        out_shape=(
            jax.ShapeDtypeStruct((1, H), f32),
            jax.ShapeDtypeStruct((1, H), f32),
            jax.ShapeDtypeStruct((Bp, H), f32),
            jax.ShapeDtypeStruct((Bp, H), f32),
            jax.ShapeDtypeStruct((Bp, 1), f32),
        ),
        compiler_params=pltpu.CompilerParams(
            dimension_semantics=("arbitrary",),
            vmem_limit_bytes=24 * 1024 * 1024),
        cost_estimate=reduce_cost,
    )(h_V, bid_lane, xsum, xsq, g1, be1, w1, b1, w2, b2)

    # ----- finalize (tiny, grid-less): BN2 affine, per-graph mean, gating MLP
    def finalize_kernel(ys_ref, yq_ref, g2_ref, be2_ref, sx_ref, sy_ref, cnt_ref,
                        wg1_ref, bg1_ref, wg2_ref, bg2_ref, wg3_ref, bg3_ref,
                        scale2_ref, shift2_ref, gate_ref):
        mu2 = ys_ref[...] * inv_n
        var2 = yq_ref[...] * inv_n - mu2 * mu2
        scale2 = g2_ref[...] * jax.lax.rsqrt(var2 + EPS)
        shift2 = be2_ref[...] - mu2 * scale2
        scale2_ref[...] = scale2
        shift2_ref[...] = shift2

        cnt = cnt_ref[...]
        cnt_safe = jnp.maximum(cnt, 1.0)   # empty/padded graphs -> mean 0 (PyTorch would NaN)
        # sum_g(h) = sum_g(x) + scale2*sum_g(y) + count_g*shift2   (dh affine in y)
        sum_h = sx_ref[...] + sy_ref[...] * scale2 + cnt * shift2
        c = sum_h / cnt_safe

        g = jnp.dot(c, wg1_ref[...], preferred_element_type=jnp.float32) + bg1_ref[...]
        g = jnp.maximum(g, 0.0)
        g = jnp.dot(g, wg2_ref[...], preferred_element_type=jnp.float32) + bg2_ref[...]
        g = jnp.maximum(g, 0.0)
        g = jnp.dot(g, wg3_ref[...], preferred_element_type=jnp.float32) + bg3_ref[...]
        gate_ref[...] = jax.nn.sigmoid(g)

    vmem = pl.BlockSpec(memory_space=pltpu.MemorySpace.VMEM)
    scale2, shift2, gate = pl.pallas_call(
        finalize_kernel,
        in_specs=[vmem] * 13,
        out_specs=(vmem, vmem, vmem),
        out_shape=(jax.ShapeDtypeStruct((1, H), f32),
                   jax.ShapeDtypeStruct((1, H), f32),
                   jax.ShapeDtypeStruct((Bp, H), f32)),
    )(ysum, ysq, g2, be2, segx, segy, cnt, wg1, bg1, wg2, bg2, wg3, bg3)

    # ----- pass 3 (parallel): recompute MLP, residual + BN2 + per-graph gate
    def apply_kernel(x_ref, bids_ref, xs_ref, xq_ref, g1_ref, be1_ref,
                     w1_ref, b1_ref, w2_ref, b2_ref,
                     s2_ref, sh2_ref, gate_ref, out_ref):
        xt = x_ref[...].astype(jnp.float32)
        y = _bn1_mlp(xt, xs_ref[...], xq_ref[...], g1_ref[...], be1_ref[...],
                     w1_ref[...], b1_ref[...], w2_ref[...], b2_ref[...])
        h = xt + y * s2_ref[...] + sh2_ref[...]
        onehot = (bids_ref[...] ==
                  jax.lax.broadcasted_iota(jnp.int32, (TM, Bp), 1)).astype(jnp.float32)
        gate_n = jnp.dot(onehot, gate_ref[...], preferred_element_type=jnp.float32)
        out_ref[...] = (h * gate_n).astype(out_ref.dtype)

    apply_cost = pl.CostEstimate(
        flops=4 * N * H * Dh + 2 * N * Bp * H,
        transcendentals=nt * H,
        bytes_accessed=2 * N * H * itemsize + N * 4 + 2 * H * Dh * 2,
    )

    out = pl.pallas_call(
        apply_kernel,
        grid=(nt,),
        in_specs=[
            pl.BlockSpec((TM, H), lambda i: (i, 0)),   # x tile
            pl.BlockSpec((TM, 1), lambda i: (i, 0)),   # batch_id (sublane-major)
            pl.BlockSpec((1, H), lambda i: (0, 0)),    # BN1 sum
            pl.BlockSpec((1, H), lambda i: (0, 0)),    # BN1 sumsq
            pl.BlockSpec((1, H), lambda i: (0, 0)),    # BN1 gamma
            pl.BlockSpec((1, H), lambda i: (0, 0)),    # BN1 beta
            pl.BlockSpec((H, Dh), lambda i: (0, 0)),   # W1 (bf16)
            pl.BlockSpec((1, Dh), lambda i: (0, 0)),   # b1
            pl.BlockSpec((Dh, H), lambda i: (0, 0)),   # W2 (bf16)
            pl.BlockSpec((1, H), lambda i: (0, 0)),    # b2
            pl.BlockSpec((1, H), lambda i: (0, 0)),    # BN2 scale
            pl.BlockSpec((1, H), lambda i: (0, 0)),    # BN2 shift
            pl.BlockSpec((Bp, H), lambda i: (0, 0)),   # gate per graph
        ],
        out_specs=pl.BlockSpec((TM, H), lambda i: (i, 0)),
        out_shape=jax.ShapeDtypeStruct((N, H), out_dtype),
        compiler_params=pltpu.CompilerParams(
            dimension_semantics=("parallel",),
            vmem_limit_bytes=24 * 1024 * 1024),
        cost_estimate=apply_cost,
    )(h_V, bid_sub, xsum, xsq, g1, be1, w1, b1, w2, b2, scale2, shift2, gate)

    return out


# num_graphs is static (the caller knows its batch size) so there is no host
# sync / np.unique in the dispatch path.  PyTorch's `sigmoid(...)[batch_id]`
# indexing already requires batch_id to be contiguous labels 0..B-1.
update_node = jax.jit(_update_node_impl, static_argnames=("num_graphs",))


def make_params(key, H):
    """Deterministic synthetic params. Linear weights stored as [in, out]."""
    ks = jax.random.split(key, 16)

    def lin(kw, kb, fan_in, fan_out):
        bound = 1.0 / np.sqrt(fan_in)
        w = jax.random.uniform(kw, (fan_in, fan_out), jnp.float32, -bound, bound)
        b = jax.random.uniform(kb, (1, fan_out), jnp.float32, -bound, bound)
        return w, b

    w1, b1 = lin(ks[0], ks[1], H, 4 * H)
    w2, b2 = lin(ks[2], ks[3], 4 * H, H)
    wg1, bg1 = lin(ks[4], ks[5], H, H)
    wg2, bg2 = lin(ks[6], ks[7], H, H)
    wg3, bg3 = lin(ks[8], ks[9], H, H)

    return dict(
        bn1_g=jax.random.uniform(ks[10], (1, H), jnp.float32, 0.5, 1.5),
        bn1_b=jax.random.uniform(ks[11], (1, H), jnp.float32, -0.5, 0.5),
        bn2_g=jax.random.uniform(ks[12], (1, H), jnp.float32, 0.5, 1.5),
        bn2_b=jax.random.uniform(ks[13], (1, H), jnp.float32, -0.5, 0.5),
        w1=w1, b1=b1, w2=w2, b2=b2,
        wg1=wg1, bg1=bg1, wg2=wg2, bg2=bg2, wg3=wg3, bg3=bg3,
    )


def reference(h_V, batch_id, params, num_graphs):
    """Pure-JAX reference mirroring the kernel numerics (training-mode BN with
    biased variance; the two big matmuls in bf16 with f32 accumulation, exactly
    as the kernel runs them on the MXU).  Semantically identical to the PyTorch
    forward up to the bf16 matmul precision."""
    x = h_V.astype(jnp.float32)
    mu1 = jnp.mean(x, axis=0, keepdims=True)
    var1 = jnp.mean(x * x, axis=0, keepdims=True) - mu1 * mu1
    scale1 = params["bn1_g"] * jax.lax.rsqrt(var1 + EPS)
    shift1 = params["bn1_b"] - mu1 * scale1
    xn = x * scale1 + shift1
    t = jnp.dot(xn.astype(jnp.bfloat16), params["w1"].astype(jnp.bfloat16),
                preferred_element_type=jnp.float32) + params["b1"]
    t = jnp.maximum(t, 0.0)
    y = jnp.dot(t.astype(jnp.bfloat16), params["w2"].astype(jnp.bfloat16),
                preferred_element_type=jnp.float32) + params["b2"]
    mu2 = jnp.mean(y, axis=0, keepdims=True)
    var2 = jnp.mean(y * y, axis=0, keepdims=True) - mu2 * mu2
    scale2 = params["bn2_g"] * jax.lax.rsqrt(var2 + EPS)
    shift2 = params["bn2_b"] - mu2 * scale2
    h = x + y * scale2 + shift2

    B = num_graphs
    counts = jnp.zeros((B,), jnp.float32).at[batch_id].add(1.0)
    csum = jnp.zeros((B, h.shape[1]), jnp.float32).at[batch_id].add(h)
    c = csum / counts[:, None]
    g = jnp.maximum(c @ params["wg1"] + params["bg1"], 0.0)
    g = jnp.maximum(g @ params["wg2"] + params["bg2"], 0.0)
    gate = jax.nn.sigmoid(g @ params["wg3"] + params["bg3"])
    return h * gate[batch_id]


if __name__ == "__main__":
    N, H = 16, 32          # nodes, hidden dim
    B = 4                  # graphs in the batch
    key = jax.random.PRNGKey(0)
    k_x, k_p = jax.random.split(key)

    h_V = jax.random.normal(k_x, (N, H), jnp.float32)
    batch_id = jnp.array([0, 0, 0, 0, 1, 1, 1, 1, 2, 2, 2, 2, 3, 3, 3, 3],
                         dtype=jnp.int32)
    params = make_params(k_p, H)

    out = update_node(h_V, batch_id, params, num_graphs=B)
    out = jax.block_until_ready(out)

    ref = jax.block_until_ready(reference(h_V, batch_id, params, B))
    np.testing.assert_allclose(np.asarray(out), np.asarray(ref),
                               rtol=5e-3, atol=5e-3)
    print("KERNEL_OK")
</pallas_src>

<mosaic_0001>
module attributes {stable_mosaic.version = 11 : i64} {
  func.func @stats_kernel(%arg0: i32, %arg1: memref<16x32xf32, #tpu.memory_space<vmem>>, %arg2: memref<1x32xf32, #tpu.memory_space<vmem>>, %arg3: memref<1x32xf32, #tpu.memory_space<vmem>>) attributes {dimension_semantics = [#tpu.dimension_semantics<arbitrary>], iteration_bounds = array<i64: 1>, scalar_prefetch = 0 : i64, scratch_operands = 0 : i64, tpu.core_type = #tpu.core_type<tc>, window_params = [{transform_indices = @transform_0, window_bounds = array<i64: 16, 32>}, {pipeline_mode = #tpu.pipeline_mode<synchronous>, transform_indices = @transform_1, window_bounds = array<i64: 1, 32>}, {pipeline_mode = #tpu.pipeline_mode<synchronous>, transform_indices = @transform_2, window_bounds = array<i64: 1, 32>}]} {
    %c0_i32 = arith.constant 0 : i32
    %0 = arith.cmpi eq, %arg0, %c0_i32 : i32
    %1 = arith.extui %0 : i1 to i32
    %c0_i32_0 = arith.constant 0 : i32
    %2 = arith.cmpi ne, %1, %c0_i32_0 : i32
    scf.if %2 {
      %cst_13 = arith.constant 0.000000e+00 : f32
      %25 = vector.broadcast %cst_13 : f32 to vector<1x32xf32>
      %c0_14 = arith.constant 0 : index
      %c0_15 = arith.constant 0 : index
      %26 = vector.load %arg2[%c0_14, %c0_15] : memref<1x32xf32, #tpu.memory_space<vmem>>, vector<1x32xf32>
      tpu.vector_store %arg2[%c0_14, %c0_15], %25 {strides = array<i32>} : memref<1x32xf32, #tpu.memory_space<vmem>>, vector<1x32xf32>,
      %cst_16 = arith.constant 0.000000e+00 : f32
      %27 = vector.broadcast %cst_16 : f32 to vector<1x32xf32>
      %c0_17 = arith.constant 0 : index
      %c0_18 = arith.constant 0 : index
      %28 = vector.load %arg3[%c0_17, %c0_18] : memref<1x32xf32, #tpu.memory_space<vmem>>, vector<1x32xf32>
      tpu.vector_store %arg3[%c0_17, %c0_18], %27 {strides = array<i32>} : memref<1x32xf32, #tpu.memory_space<vmem>>, vector<1x32xf32>,
    } else {
    }
    %c16_i32 = arith.constant 16 : i32
    %3 = arith.muli %arg0, %c16_i32 : i32
    %4 = tpu.iota {dimensions = array<i32: 0>} : vector<16x1xi32>
    %5 = vector.broadcast %3 : i32 to vector<16x1xi32>
    %6 = arith.addi %5, %4 : vector<16x1xi32>
    %c16_i32_1 = arith.constant 16 : i32
    %7 = vector.broadcast %c16_i32_1 : i32 to vector<16x1xi32>
    %8 = arith.cmpi slt, %6, %7 : vector<16x1xi32>
    %c0 = arith.constant 0 : index
    %c0_2 = arith.constant 0 : index
    %9 = vector.load %arg1[%c0, %c0_2] : memref<16x32xf32, #tpu.memory_space<vmem>>, vector<16x32xf32>
    %cst = arith.constant 0.000000e+00 : f32
    %10 = vector.shape_cast %8 : vector<16x1xi1> to vector<16x1xi1>
    %11 = vector.broadcast %10 : vector<16x1xi1> to vector<16x32xi1>
    %12 = vector.broadcast %cst : f32 to vector<16x32xf32>
    %13 = arith.select %11, %9, %12 : vector<16x32xi1>, vector<16x32xf32>
    %c0_3 = arith.constant 0 : index
    %c0_4 = arith.constant 0 : index
    %14 = vector.load %arg2[%c0_3, %c0_4] : memref<1x32xf32, #tpu.memory_space<vmem>>, vector<1x32xf32>
    %cst_5 = arith.constant dense<0.000000e+00> : vector<32xf32>
    %15 = vector.multi_reduction <add>, %13, %cst_5 [0] : vector<16x32xf32> to vector<32xf32>
    %16 = vector.shape_cast %15 : vector<32xf32> to vector<1x32xf32>
    %17 = arith.addf %14, %16 : vector<1x32xf32>
    %c0_6 = arith.constant 0 : index
    %c0_7 = arith.constant 0 : index
    %18 = vector.load %arg2[%c0_6, %c0_7] : memref<1x32xf32, #tpu.memory_space<vmem>>, vector<1x32xf32>
    tpu.vector_store %arg2[%c0_6, %c0_7], %17 {strides = array<i32>} : memref<1x32xf32, #tpu.memory_space<vmem>>, vector<1x32xf32>,
    %c0_8 = arith.constant 0 : index
    %c0_9 = arith.constant 0 : index
    %19 = vector.load %arg3[%c0_8, %c0_9] : memref<1x32xf32, #tpu.memory_space<vmem>>, vector<1x32xf32>
    %20 = arith.mulf %13, %13 : vector<16x32xf32>
    %cst_10 = arith.constant dense<0.000000e+00> : vector<32xf32>
    %21 = vector.multi_reduction <add>, %20, %cst_10 [0] : vector<16x32xf32> to vector<32xf32>
    %22 = vector.shape_cast %21 : vector<32xf32> to vector<1x32xf32>
    %23 = arith.addf %19, %22 : vector<1x32xf32>
    %c0_11 = arith.constant 0 : index
    %c0_12 = arith.constant 0 : index
    %24 = vector.load %arg3[%c0_11, %c0_12] : memref<1x32xf32, #tpu.memory_space<vmem>>, vector<1x32xf32>
    tpu.vector_store %arg3[%c0_11, %c0_12], %23 {strides = array<i32>} : memref<1x32xf32, #tpu.memory_space<vmem>>, vector<1x32xf32>,
    return
  }
  func.func @transform_0(%arg0: i32) -> (i32, i32) {
    %c0_i32 = arith.constant 0 : i32
    %c0_i32_0 = arith.constant 0 : i32
    return %arg0, %c0_i32 : i32, i32
  }
  func.func @transform_1(%arg0: i32) -> (i32, i32) {
    %c0_i32 = arith.constant 0 : i32
    %c0_i32_0 = arith.constant 0 : i32
    %c0_i32_1 = arith.constant 0 : i32
    return %c0_i32, %c0_i32_0 : i32, i32
  }
  func.func @transform_2(%arg0: i32) -> (i32, i32) {
    %c0_i32 = arith.constant 0 : i32
    %c0_i32_0 = arith.constant 0 : i32
    %c0_i32_1 = arith.constant 0 : i32
    return %c0_i32, %c0_i32_0 : i32, i32
  }
}

module attributes {stable_mosaic.version = 11 : i64} {
  func.func @reduce_kernel(%arg0: i32, %arg1: memref<16x32xf32, #tpu.memory_space<vmem>>, %arg2: memref<1x16xi32, #tpu.memory_space<vmem>>, %arg3: memref<1x32xf32, #tpu.memory_space<vmem>>, %arg4: memref<1x32xf32, #tpu.memory_space<vmem>>, %arg5: memref<1x32xf32, #tpu.memory_space<vmem>>, %arg6: memref<1x32xf32, #tpu.memory_space<vmem>>, %arg7: memref<32x128xbf16, #tpu.memory_space<vmem>>, %arg8: memref<1x128xf32, #tpu.memory_space<vmem>>, %arg9: memref<128x32xbf16, #tpu.memory_space<vmem>>, %arg10: memref<1x32xf32, #tpu.memory_space<vmem>>, %arg11: memref<1x32xf32, #tpu.memory_space<vmem>>, %arg12: memref<1x32xf32, #tpu.memory_space<vmem>>, %arg13: memref<8x32xf32, #tpu.memory_space<vmem>>, %arg14: memref<8x32xf32, #tpu.memory_space<vmem>>, %arg15: memref<8x1xf32, #tpu.memory_space<vmem>>) attributes {dimension_semantics = [#tpu.dimension_semantics<arbitrary>], iteration_bounds = array<i64: 1>, scalar_prefetch = 0 : i64, scratch_operands = 0 : i64, tpu.core_type = #tpu.core_type<tc>, window_params = [{transform_indices = @transform_0, window_bounds = array<i64: 16, 32>}, {transform_indices = @transform_1, window_bounds = array<i64: 1, 16>}, {pipeline_mode = #tpu.pipeline_mode<synchronous>, transform_indices = @transform_2, window_bounds = array<i64: 1, 32>}, {pipeline_mode = #tpu.pipeline_mode<synchronous>, transform_indices = @transform_3, window_bounds = array<i64: 1, 32>}, {pipeline_mode = #tpu.pipeline_mode<synchronous>, transform_indices = @transform_4, window_bounds = array<i64: 1, 32>}, {pipeline_mode = #tpu.pipeline_mode<synchronous>, transform_indices = @transform_5, window_bounds = array<i64: 1, 32>}, {pipeline_mode = #tpu.pipeline_mode<synchronous>, transform_indices = @transform_6, window_bounds = array<i64: 32, 128>}, {pipeline_mode = #tpu.pipeline_mode<synchronous>, transform_indices = @transform_7, window_bounds = array<i64: 1, 128>}, {pipeline_mode = #tpu.pipeline_mode<synchronous>, transform_indices = @transform_8, window_bounds = array<i64: 128, 32>}, {pipeline_mode = #tpu.pipeline_mode<synchronous>, transform_indices = @transform_9, window_bounds = array<i64: 1, 32>}, {pipeline_mode = #tpu.pipeline_mode<synchronous>, transform_indices = @transform_10, window_bounds = array<i64: 1, 32>}, {pipeline_mode = #tpu.pipeline_mode<synchronous>, transform_indices = @transform_11, window_bounds = array<i64: 1, 32>}, {pipeline_mode = #tpu.pipeline_mode<synchronous>, transform_indices = @transform_12, window_bounds = array<i64: 8, 32>}, {pipeline_mode = #tpu.pipeline_mode<synchronous>, transform_indices = @transform_13, window_bounds = array<i64: 8, 32>}, {pipeline_mode = #tpu.pipeline_mode<synchronous>, transform_indices = @transform_14, window_bounds = array<i64: 8, 1>}]} {
    %c0_i32 = arith.constant 0 : i32
    %0 = arith.cmpi eq, %arg0, %c0_i32 : i32
    %1 = arith.extui %0 : i1 to i32
    %c0_i32_0 = arith.constant 0 : i32
    %2 = arith.cmpi ne, %1, %c0_i32_0 : i32
    scf.if %2 {
      %cst_57 = arith.constant 0.000000e+00 : f32
      %91 = vector.broadcast %cst_57 : f32 to vector<1x32xf32>
      %c0_58 = arith.constant 0 : index
      %c0_59 = arith.constant 0 : index
      %92 = vector.load %arg11[%c0_58, %c0_59] : memref<1x32xf32, #tpu.memory_space<vmem>>, vector<1x32xf32>
      tpu.vector_store %arg11[%c0_58, %c0_59], %91 {strides = array<i32>} : memref<1x32xf32, #tpu.memory_space<vmem>>, vector<1x32xf32>,
      %cst_60 = arith.constant 0.000000e+00 : f32
      %93 = vector.broadcast %cst_60 : f32 to vector<1x32xf32>
      %c0_61 = arith.constant 0 : index
      %c0_62 = arith.constant 0 : index
      %94 = vector.load %arg12[%c0_61, %c0_62] : memref<1x32xf32, #tpu.memory_space<vmem>>, vector<1x32xf32>
      tpu.vector_store %arg12[%c0_61, %c0_62], %93 {strides = array<i32>} : memref<1x32xf32, #tpu.memory_space<vmem>>, vector<1x32xf32>,
      %cst_63 = arith.constant 0.000000e+00 : f32
      %95 = vector.broadcast %cst_63 : f32 to vector<8x32xf32>
      %c0_64 = arith.constant 0 : index
      %c0_65 = arith.constant 0 : index
      %96 = vector.load %arg13[%c0_64, %c0_65] : memref<8x32xf32, #tpu.memory_space<vmem>>, vector<8x32xf32>
      tpu.vector_store %arg13[%c0_64, %c0_65], %95 {strides = array<i32>} : memref<8x32xf32, #tpu.memory_space<vmem>>, vector<8x32xf32>,
      %cst_66 = arith.constant 0.000000e+00 : f32
      %97 = vector.broadcast %cst_66 : f32 to vector<8x32xf32>
      %c0_67 = arith.constant 0 : index
      %c0_68 = arith.constant 0 : index
      %98 = vector.load %arg14[%c0_67, %c0_68] : memref<8x32xf32, #tpu.memory_space<vmem>>, vector<8x32xf32>
      tpu.vector_store %arg14[%c0_67, %c0_68], %97 {strides = array<i32>} : memref<8x32xf32, #tpu.memory_space<vmem>>, vector<8x32xf32>,
      %cst_69 = arith.constant 0.000000e+00 : f32
      %99 = vector.broadcast %cst_69 : f32 to vector<8x1xf32>
      %c0_70 = arith.constant 0 : index
      %c0_71 = arith.constant 0 : index
      %100 = vector.load %arg15[%c0_70, %c0_71] : memref<8x1xf32, #tpu.memory_space<vmem>>, vector<8x1xf32>
      tpu.vector_store %arg15[%c0_70, %c0_71], %99 {strides = array<i32>} : memref<8x1xf32, #tpu.memory_space<vmem>>, vector<8x1xf32>,
    } else {
    }
    %c16_i32 = arith.constant 16 : i32
    %3 = arith.muli %arg0, %c16_i32 : i32
    %4 = tpu.iota {dimensions = array<i32: 0>} : vector<16x1xi32>
    %5 = vector.broadcast %3 : i32 to vector<16x1xi32>
    %6 = arith.addi %5, %4 : vector<16x1xi32>
    %c16_i32_1 = arith.constant 16 : i32
    %7 = vector.broadcast %c16_i32_1 : i32 to vector<16x1xi32>
    %8 = arith.cmpi slt, %6, %7 : vector<16x1xi32>
    %c0 = arith.constant 0 : index
    %c0_2 = arith.constant 0 : index
    %9 = vector.load %arg1[%c0, %c0_2] : memref<16x32xf32, #tpu.memory_space<vmem>>, vector<16x32xf32>
    %cst = arith.constant 0.000000e+00 : f32
    %10 = vector.shape_cast %8 : vector<16x1xi1> to vector<16x1xi1>
    %11 = vector.broadcast %10 : vector<16x1xi1> to vector<16x32xi1>
    %12 = vector.broadcast %cst : f32 to vector<16x32xf32>
    %13 = arith.select %11, %9, %12 : vector<16x32xi1>, vector<16x32xf32>
    %c0_3 = arith.constant 0 : index
    %c0_4 = arith.constant 0 : index
    %14 = vector.load %arg3[%c0_3, %c0_4] : memref<1x32xf32, #tpu.memory_space<vmem>>, vector<1x32xf32>
    %c0_5 = arith.constant 0 : index
    %c0_6 = arith.constant 0 : index
    %15 = vector.load %arg4[%c0_5, %c0_6] : memref<1x32xf32, #tpu.memory_space<vmem>>, vector<1x32xf32>
    %c0_7 = arith.constant 0 : index
    %c0_8 = arith.constant 0 : index
    %16 = vector.load %arg5[%c0_7, %c0_8] : memref<1x32xf32, #tpu.memory_space<vmem>>, vector<1x32xf32>
    %c0_9 = arith.constant 0 : index
    %c0_10 = arith.constant 0 : index
    %17 = vector.load %arg6[%c0_9, %c0_10] : memref<1x32xf32, #tpu.memory_space<vmem>>, vector<1x32xf32>
    %c0_11 = arith.constant 0 : index
    %c0_12 = arith.constant 0 : index
    %18 = vector.load %arg7[%c0_11, %c0_12] : memref<32x128xbf16, #tpu.memory_space<vmem>>, vector<32x128xbf16>
    %c0_13 = arith.constant 0 : index
    %c0_14 = arith.constant 0 : index
    %19 = vector.load %arg8[%c0_13, %c0_14] : memref<1x128xf32, #tpu.memory_space<vmem>>, vector<1x128xf32>
    %c0_15 = arith.constant 0 : index
    %c0_16 = arith.constant 0 : index
    %20 = vector.load %arg9[%c0_15, %c0_16] : memref<128x32xbf16, #tpu.memory_space<vmem>>, vector<128x32xbf16>
    %c0_17 = arith.constant 0 : index
    %c0_18 = arith.constant 0 : index
    %21 = vector.load %arg10[%c0_17, %c0_18] : memref<1x32xf32, #tpu.memory_space<vmem>>, vector<1x32xf32>
    %cst_19 = arith.constant 6.250000e-02 : f32
    %22 = vector.broadcast %cst_19 : f32 to vector<1x32xf32>
    %23 = arith.mulf %14, %22 : vector<1x32xf32>
    %cst_20 = arith.constant 6.250000e-02 : f32
    %24 = vector.broadcast %cst_20 : f32 to vector<1x32xf32>
    %25 = arith.mulf %15, %24 : vector<1x32xf32>
    %26 = arith.mulf %23, %23 : vector<1x32xf32>
    %27 = arith.subf %25, %26 : vector<1x32xf32>
    %cst_21 = arith.constant 9.99999974E-6 : f32
    %28 = vector.broadcast %cst_21 : f32 to vector<1x32xf32>
    %29 = arith.addf %27, %28 : vector<1x32xf32>
    %30 = math.rsqrt %29 : vector<1x32xf32>
    %31 = arith.mulf %16, %30 : vector<1x32xf32>
    %32 = arith.mulf %23, %31 : vector<1x32xf32>
    %33 = arith.subf %17, %32 : vector<1x32xf32>
    %34 = vector.broadcast %31 : vector<1x32xf32> to vector<16x32xf32>
    %35 = arith.mulf %13, %34 : vector<16x32xf32>
    %36 = vector.broadcast %33 : vector<1x32xf32> to vector<16x32xf32>
    %37 = arith.addf %35, %36 : vector<16x32xf32>
    %38 = arith.truncf %37 : vector<16x32xf32> to vector<16x32xbf16>
    %cst_22 = arith.constant dense<0.000000e+00> : vector<16x128xf32>
    %39 = tpu.matmul %38, %18, %cst_22 {dimension_numbers = #tpu.dot_dimension_numbers<[1], [0], [0], [1], [0, 0, 1, 1], [], []>} : vector<16x32xbf16>, vector<32x128xbf16>, vector<16x128xf32> -> vector<16x128xf32>
    %40 = vector.broadcast %19 : vector<1x128xf32> to vector<16x128xf32>
    %41 = arith.addf %39, %40 : vector<16x128xf32>
    %cst_23 = arith.constant 0.000000e+00 : f32
    %42 = vector.broadcast %cst_23 : f32 to vector<16x128xf32>
    %43 = arith.maximumf %41, %42 : vector<16x128xf32>
    %44 = arith.truncf %43 : vector<16x128xf32> to vector<16x128xbf16>
    %cst_24 = arith.constant dense<0.000000e+00> : vector<16x32xf32>
    %45 = tpu.matmul %44, %20, %cst_24 {dimension_numbers = #tpu.dot_dimension_numbers<[1], [0], [0], [1], [0, 0, 1, 1], [], []>} : vector<16x128xbf16>, vector<128x32xbf16>, vector<16x32xf32> -> vector<16x32xf32>
    %46 = vector.broadcast %21 : vector<1x32xf32> to vector<16x32xf32>
    %47 = arith.addf %45, %46 : vector<16x32xf32>
    %cst_25 = arith.constant 0.000000e+00 : f32
    %48 = vector.shape_cast %8 : vector<16x1xi1> to vector<16x1xi1>
    %49 = vector.broadcast %48 : vector<16x1xi1> to vector<16x32xi1>
    %50 = vector.broadcast %cst_25 : f32 to vector<16x32xf32>
    %51 = arith.select %49, %47, %50 : vector<16x32xi1>, vector<16x32xf32>
    %c0_26 = arith.constant 0 : index
    %c0_27 = arith.constant 0 : index
    %52 = vector.load %arg11[%c0_26, %c0_27] : memref<1x32xf32, #tpu.memory_space<vmem>>, vector<1x32xf32>
    %cst_28 = arith.constant dense<0.000000e+00> : vector<32xf32>
    %53 = vector.multi_reduction <add>, %51, %cst_28 [0] : vector<16x32xf32> to vector<32xf32>
    %54 = vector.shape_cast %53 : vector<32xf32> to vector<1x32xf32>
    %55 = arith.addf %52, %54 : vector<1x32xf32>
    %c0_29 = arith.constant 0 : index
    %c0_30 = arith.constant 0 : index
    %56 = vector.load %arg11[%c0_29, %c0_30] : memref<1x32xf32, #tpu.memory_space<vmem>>, vector<1x32xf32>
    tpu.vector_store %arg11[%c0_29, %c0_30], %55 {strides = array<i32>} : memref<1x32xf32, #tpu.memory_space<vmem>>, vector<1x32xf32>,
    %c0_31 = arith.constant 0 : index
    %c0_32 = arith.constant 0 : index
    %57 = vector.load %arg12[%c0_31, %c0_32] : memref<1x32xf32, #tpu.memory_space<vmem>>, vector<1x32xf32>
    %58 = arith.mulf %51, %51 : vector<16x32xf32>
    %cst_33 = arith.constant dense<0.000000e+00> : vector<32xf32>
    %59 = vector.multi_reduction <add>, %58, %cst_33 [0] : vector<16x32xf32> to vector<32xf32>
    %60 = vector.shape_cast %59 : vector<32xf32> to vector<1x32xf32>
    %61 = arith.addf %57, %60 : vector<1x32xf32>
    %c0_34 = arith.constant 0 : index
    %c0_35 = arith.constant 0 : index
    %62 = vector.load %arg12[%c0_34, %c0_35] : memref<1x32xf32, #tpu.memory_space<vmem>>, vector<1x32xf32>
    tpu.vector_store %arg12[%c0_34, %c0_35], %61 {strides = array<i32>} : memref<1x32xf32, #tpu.memory_space<vmem>>, vector<1x32xf32>,
    %c16_i32_36 = arith.constant 16 : i32
    %63 = arith.muli %arg0, %c16_i32_36 : i32
    %64 = tpu.iota {dimensions = array<i32: 1>} : vector<1x16xi32>
    %65 = vector.broadcast %63 : i32 to vector<1x16xi32>
    %66 = arith.addi %65, %64 : vector<1x16xi32>
    %67 = tpu.iota {dimensions = array<i32: 0>} : vector<8x16xi32>
    %c0_37 = arith.constant 0 : index
    %c0_38 = arith.constant 0 : index
    %68 = vector.load %arg2[%c0_37, %c0_38] : memref<1x16xi32, #tpu.memory_space<vmem>>, vector<1x16xi32>
    %69 = vector.broadcast %68 : vector<1x16xi32> to vector<8x16xi32>
    %70 = arith.cmpi eq, %67, %69 : vector<8x16xi32>
    %c16_i32_39 = arith.constant 16 : i32
    %71 = vector.broadcast %c16_i32_39 : i32 to vector<1x16xi32>
    %72 = arith.cmpi slt, %66, %71 : vector<1x16xi32>
    %73 = vector.broadcast %72 : vector<1x16xi1> to vector<8x16xi1>
    %74 = arith.andi %70, %73 : vector<8x16xi1>
    %cst_40 = arith.constant 1.000000e+00 : f32
    %cst_41 = arith.constant 0.000000e+00 : f32
    %75 = vector.broadcast %cst_40 : f32 to vector<8x16xf32>
    %76 = vector.broadcast %cst_41 : f32 to vector<8x16xf32>
    %77 = arith.select %74, %75, %76 : vector<8x16xi1>, vector<8x16xf32>
    %c0_42 = arith.constant 0 : index
    %c0_43 = arith.constant 0 : index
    %78 = vector.load %arg13[%c0_42, %c0_43] : memref<8x32xf32, #tpu.memory_space<vmem>>, vector<8x32xf32>
    %cst_44 = arith.constant dense<0.000000e+00> : vector<8x32xf32>
    %79 = tpu.matmul %77, %13, %cst_44 {dimension_numbers = #tpu.dot_dimension_numbers<[1], [0], [0], [1], [0, 0, 1, 1], [], []>} : vector<8x16xf32>, vector<16x32xf32>, vector<8x32xf32> -> vector<8x32xf32>
    %80 = arith.addf %78, %79 : vector<8x32xf32>
    %c0_45 = arith.constant 0 : index
    %c0_46 = arith.constant 0 : index
    %81 = vector.load %arg13[%c0_45, %c0_46] : memref<8x32xf32, #tpu.memory_space<vmem>>, vector<8x32xf32>
    tpu.vector_store %arg13[%c0_45, %c0_46], %80 {strides = array<i32>} : memref<8x32xf32, #tpu.memory_space<vmem>>, vector<8x32xf32>,
    %c0_47 = arith.constant 0 : index
    %c0_48 = arith.constant 0 : index
    %82 = vector.load %arg14[%c0_47, %c0_48] : memref<8x32xf32, #tpu.memory_space<vmem>>, vector<8x32xf32>
    %cst_49 = arith.constant dense<0.000000e+00> : vector<8x32xf32>
    %83 = tpu.matmul %77, %51, %cst_49 {dimension_numbers = #tpu.dot_dimension_numbers<[1], [0], [0], [1], [0, 0, 1, 1], [], []>} : vector<8x16xf32>, vector<16x32xf32>, vector<8x32xf32> -> vector<8x32xf32>
    %84 = arith.addf %82, %83 : vector<8x32xf32>
    %c0_50 = arith.constant 0 : index
    %c0_51 = arith.constant 0 : index
    %85 = vector.load %arg14[%c0_50, %c0_51] : memref<8x32xf32, #tpu.memory_space<vmem>>, vector<8x32xf32>
    tpu.vector_store %arg14[%c0_50, %c0_51], %84 {strides = array<i32>} : memref<8x32xf32, #tpu.memory_space<vmem>>, vector<8x32xf32>,
    %c0_52 = arith.constant 0 : index
    %c0_53 = arith.constant 0 : index
    %86 = vector.load %arg15[%c0_52, %c0_53] : memref<8x1xf32, #tpu.memory_space<vmem>>, vector<8x1xf32>
    %cst_54 = arith.constant dense<0.000000e+00> : vector<8xf32>
    %87 = vector.multi_reduction <add>, %77, %cst_54 [1] : vector<8x16xf32> to vector<8xf32>
    %88 = vector.shape_cast %87 : vector<8xf32> to vector<8x1xf32>
    %89 = arith.addf %86, %88 : vector<8x1xf32>
    %c0_55 = arith.constant 0 : index
    %c0_56 = arith.constant 0 : index
    %90 = vector.load %arg15[%c0_55, %c0_56] : memref<8x1xf32, #tpu.memory_space<vmem>>, vector<8x1xf32>
    tpu.vector_store %arg15[%c0_55, %c0_56], %89 {strides = array<i32>} : memref<8x1xf32, #tpu.memory_space<vmem>>, vector<8x1xf32>,
    return
  }
  func.func @transform_0(%arg0: i32) -> (i32, i32) {
    %c0_i32 = arith.constant 0 : i32
    %c0_i32_0 = arith.constant 0 : i32
    return %arg0, %c0_i32 : i32, i32
  }
  func.func @transform_1(%arg0: i32) -> (i32, i32) {
    %c0_i32 = arith.constant 0 : i32
    %c0_i32_0 = arith.constant 0 : i32
    return %c0_i32, %arg0 : i32, i32
  }
  func.func @transform_2(%arg0: i32) -> (i32, i32) {
    %c0_i32 = arith.constant 0 : i32
    %c0_i32_0 = arith.constant 0 : i32
    %c0_i32_1 = arith.constant 0 : i32
    return %c0_i32, %c0_i32_0 : i32, i32
  }
  func.func @transform_3(%arg0: i32) -> (i32, i32) {
    %c0_i32 = arith.constant 0 : i32
    %c0_i32_0 = arith.constant 0 : i32
    %c0_i32_1 = arith.constant 0 : i32
    return %c0_i32, %c0_i32_0 : i32, i32
  }
  func.func @transform_4(%arg0: i32) -> (i32, i32) {
    %c0_i32 = arith.constant 0 : i32
    %c0_i32_0 = arith.constant 0 : i32
    %c0_i32_1 = arith.constant 0 : i32
    return %c0_i32, %c0_i32_0 : i32, i32
  }
  func.func @transform_5(%arg0: i32) -> (i32, i32) {
    %c0_i32 = arith.constant 0 : i32
    %c0_i32_0 = arith.constant 0 : i32
    %c0_i32_1 = arith.constant 0 : i32
    return %c0_i32, %c0_i32_0 : i32, i32
  }
  func.func @transform_6(%arg0: i32) -> (i32, i32) {
    %c0_i32 = arith.constant 0 : i32
    %c0_i32_0 = arith.constant 0 : i32
    %c0_i32_1 = arith.constant 0 : i32
    return %c0_i32, %c0_i32_0 : i32, i32
  }
  func.func @transform_7(%arg0: i32) -> (i32, i32) {
    %c0_i32 = arith.constant 0 : i32
    %c0_i32_0 = arith.constant 0 : i32
    %c0_i32_1 = arith.constant 0 : i32
    return %c0_i32, %c0_i32_0 : i32, i32
  }
  func.func @transform_8(%arg0: i32) -> (i32, i32) {
    %c0_i32 = arith.constant 0 : i32
    %c0_i32_0 = arith.constant 0 : i32
    %c0_i32_1 = arith.constant 0 : i32
    return %c0_i32, %c0_i32_0 : i32, i32
  }
  func.func @transform_9(%arg0: i32) -> (i32, i32) {
    %c0_i32 = arith.constant 0 : i32
    %c0_i32_0 = arith.constant 0 : i32
    %c0_i32_1 = arith.constant 0 : i32
    return %c0_i32, %c0_i32_0 : i32, i32
  }
  func.func @transform_10(%arg0: i32) -> (i32, i32) {
    %c0_i32 = arith.constant 0 : i32
    %c0_i32_0 = arith.constant 0 : i32
    %c0_i32_1 = arith.constant 0 : i32
    return %c0_i32, %c0_i32_0 : i32, i32
  }
  func.func @transform_11(%arg0: i32) -> (i32, i32) {
    %c0_i32 = arith.constant 0 : i32
    %c0_i32_0 = arith.constant 0 : i32
    %c0_i32_1 = arith.constant 0 : i32
    return %c0_i32, %c0_i32_0 : i32, i32
  }
  func.func @transform_12(%arg0: i32) -> (i32, i32) {
    %c0_i32 = arith.constant 0 : i32
    %c0_i32_0 = arith.constant 0 : i32
    %c0_i32_1 = arith.constant 0 : i32
    return %c0_i32, %c0_i32_0 : i32, i32
  }
  func.func @transform_13(%arg0: i32) -> (i32, i32) {
    %c0_i32 = arith.constant 0 : i32
    %c0_i32_0 = arith.constant 0 : i32
    %c0_i32_1 = arith.constant 0 : i32
    return %c0_i32, %c0_i32_0 : i32, i32
  }
  func.func @transform_14(%arg0: i32) -> (i32, i32) {
    %c0_i32 = arith.constant 0 : i32
    %c0_i32_0 = arith.constant 0 : i32
    %c0_i32_1 = arith.constant 0 : i32
    return %c0_i32, %c0_i32_0 : i32, i32
  }
}

module attributes {stable_mosaic.version = 11 : i64} {
  func.func @finalize_kernel(%arg0: memref<1x32xf32, #tpu.memory_space<vmem>>, %arg1: memref<1x32xf32, #tpu.memory_space<vmem>>, %arg2: memref<1x32xf32, #tpu.memory_space<vmem>>, %arg3: memref<1x32xf32, #tpu.memory_space<vmem>>, %arg4: memref<8x32xf32, #tpu.memory_space<vmem>>, %arg5: memref<8x32xf32, #tpu.memory_space<vmem>>, %arg6: memref<8x1xf32, #tpu.memory_space<vmem>>, %arg7: memref<32x32xf32, #tpu.memory_space<vmem>>, %arg8: memref<1x32xf32, #tpu.memory_space<vmem>>, %arg9: memref<32x32xf32, #tpu.memory_space<vmem>>, %arg10: memref<1x32xf32, #tpu.memory_space<vmem>>, %arg11: memref<32x32xf32, #tpu.memory_space<vmem>>, %arg12: memref<1x32xf32, #tpu.memory_space<vmem>>, %arg13: memref<1x32xf32, #tpu.memory_space<vmem>>, %arg14: memref<1x32xf32, #tpu.memory_space<vmem>>, %arg15: memref<8x32xf32, #tpu.memory_space<vmem>>) attributes {dimension_semantics = [], scalar_prefetch = 0 : i64, scratch_operands = 0 : i64, tpu.core_type = #tpu.core_type<tc>} {
    %c0 = arith.constant 0 : index
    %c0_0 = arith.constant 0 : index
    %0 = vector.load %arg0[%c0, %c0_0] : memref<1x32xf32, #tpu.memory_space<vmem>>, vector<1x32xf32>
    %cst = arith.constant 6.250000e-02 : f32
    %1 = vector.broadcast %cst : f32 to vector<1x32xf32>
    %2 = arith.mulf %0, %1 : vector<1x32xf32>
    %c0_1 = arith.constant 0 : index
    %c0_2 = arith.constant 0 : index
    %3 = vector.load %arg1[%c0_1, %c0_2] : memref<1x32xf32, #tpu.memory_space<vmem>>, vector<1x32xf32>
    %cst_3 = arith.constant 6.250000e-02 : f32
    %4 = vector.broadcast %cst_3 : f32 to vector<1x32xf32>
    %5 = arith.mulf %3, %4 : vector<1x32xf32>
    %6 = arith.mulf %2, %2 : vector<1x32xf32>
    %7 = arith.subf %5, %6 : vector<1x32xf32>
    %c0_4 = arith.constant 0 : index
    %c0_5 = arith.constant 0 : index
    %8 = vector.load %arg2[%c0_4, %c0_5] : memref<1x32xf32, #tpu.memory_space<vmem>>, vector<1x32xf32>
    %cst_6 = arith.constant 9.99999974E-6 : f32
    %9 = vector.broadcast %cst_6 : f32 to vector<1x32xf32>
    %10 = arith.addf %7, %9 : vector<1x32xf32>
    %11 = math.rsqrt %10 : vector<1x32xf32>
    %12 = arith.mulf %8, %11 : vector<1x32xf32>
    %c0_7 = arith.constant 0 : index
    %c0_8 = arith.constant 0 : index
    %13 = vector.load %arg3[%c0_7, %c0_8] : memref<1x32xf32, #tpu.memory_space<vmem>>, vector<1x32xf32>
    %14 = arith.mulf %2, %12 : vector<1x32xf32>
    %15 = arith.subf %13, %14 : vector<1x32xf32>
    %c0_9 = arith.constant 0 : index
    %c0_10 = arith.constant 0 : index
    %16 = vector.load %arg13[%c0_9, %c0_10] : memref<1x32xf32, #tpu.memory_space<vmem>>, vector<1x32xf32>
    tpu.vector_store %arg13[%c0_9, %c0_10], %12 {strides = array<i32>} : memref<1x32xf32, #tpu.memory_space<vmem>>, vector<1x32xf32>,
    %c0_11 = arith.constant 0 : index
    %c0_12 = arith.constant 0 : index
    %17 = vector.load %arg14[%c0_11, %c0_12] : memref<1x32xf32, #tpu.memory_space<vmem>>, vector<1x32xf32>
    tpu.vector_store %arg14[%c0_11, %c0_12], %15 {strides = array<i32>} : memref<1x32xf32, #tpu.memory_space<vmem>>, vector<1x32xf32>,
    %c0_13 = arith.constant 0 : index
    %c0_14 = arith.constant 0 : index
    %18 = vector.load %arg6[%c0_13, %c0_14] : memref<8x1xf32, #tpu.memory_space<vmem>>, vector<8x1xf32>
    %cst_15 = arith.constant 1.000000e+00 : f32
    %19 = vector.broadcast %cst_15 : f32 to vector<8x1xf32>
    %20 = arith.maximumf %18, %19 : vector<8x1xf32>
    %c0_16 = arith.constant 0 : index
    %c0_17 = arith.constant 0 : index
    %21 = vector.load %arg4[%c0_16, %c0_17] : memref<8x32xf32, #tpu.memory_space<vmem>>, vector<8x32xf32>
    %c0_18 = arith.constant 0 : index
    %c0_19 = arith.constant 0 : index
    %22 = vector.load %arg5[%c0_18, %c0_19] : memref<8x32xf32, #tpu.memory_space<vmem>>, vector<8x32xf32>
    %23 = vector.broadcast %12 : vector<1x32xf32> to vector<8x32xf32>
    %24 = arith.mulf %22, %23 : vector<8x32xf32>
    %25 = arith.addf %21, %24 : vector<8x32xf32>
    %26 = vector.broadcast %18 : vector<8x1xf32> to vector<8x32xf32>
    %27 = vector.broadcast %15 : vector<1x32xf32> to vector<8x32xf32>
    %28 = arith.mulf %26, %27 : vector<8x32xf32>
    %29 = arith.addf %25, %28 : vector<8x32xf32>
    %30 = vector.broadcast %20 : vector<8x1xf32> to vector<8x32xf32>
    %31 = arith.divf %29, %30 : vector<8x32xf32>
    %c0_20 = arith.constant 0 : index
    %c0_21 = arith.constant 0 : index
    %32 = vector.load %arg7[%c0_20, %c0_21] : memref<32x32xf32, #tpu.memory_space<vmem>>, vector<32x32xf32>
    %cst_22 = arith.constant dense<0.000000e+00> : vector<8x32xf32>
    %33 = tpu.matmul %31, %32, %cst_22 {dimension_numbers = #tpu.dot_dimension_numbers<[1], [0], [0], [1], [0, 0, 1, 1], [], []>} : vector<8x32xf32>, vector<32x32xf32>, vector<8x32xf32> -> vector<8x32xf32>
    %c0_23 = arith.constant 0 : index
    %c0_24 = arith.constant 0 : index
    %34 = vector.load %arg8[%c0_23, %c0_24] : memref<1x32xf32, #tpu.memory_space<vmem>>, vector<1x32xf32>
    %35 = vector.broadcast %34 : vector<1x32xf32> to vector<8x32xf32>
    %36 = arith.addf %33, %35 : vector<8x32xf32>
    %cst_25 = arith.constant 0.000000e+00 : f32
    %37 = vector.broadcast %cst_25 : f32 to vector<8x32xf32>
    %38 = arith.maximumf %36, %37 : vector<8x32xf32>
    %c0_26 = arith.constant 0 : index
    %c0_27 = arith.constant 0 : index
    %39 = vector.load %arg9[%c0_26, %c0_27] : memref<32x32xf32, #tpu.memory_space<vmem>>, vector<32x32xf32>
    %cst_28 = arith.constant dense<0.000000e+00> : vector<8x32xf32>
    %40 = tpu.matmul %38, %39, %cst_28 {dimension_numbers = #tpu.dot_dimension_numbers<[1], [0], [0], [1], [0, 0, 1, 1], [], []>} : vector<8x32xf32>, vector<32x32xf32>, vector<8x32xf32> -> vector<8x32xf32>
    %c0_29 = arith.constant 0 : index
    %c0_30 = arith.constant 0 : index
    %41 = vector.load %arg10[%c0_29, %c0_30] : memref<1x32xf32, #tpu.memory_space<vmem>>, vector<1x32xf32>
    %42 = vector.broadcast %41 : vector<1x32xf32> to vector<8x32xf32>
    %43 = arith.addf %40, %42 : vector<8x32xf32>
    %cst_31 = arith.constant 0.000000e+00 : f32
    %44 = vector.broadcast %cst_31 : f32 to vector<8x32xf32>
    %45 = arith.maximumf %43, %44 : vector<8x32xf32>
    %c0_32 = arith.constant 0 : index
    %c0_33 = arith.constant 0 : index
    %46 = vector.load %arg11[%c0_32, %c0_33] : memref<32x32xf32, #tpu.memory_space<vmem>>, vector<32x32xf32>
    %cst_34 = arith.constant dense<0.000000e+00> : vector<8x32xf32>
    %47 = tpu.matmul %45, %46, %cst_34 {dimension_numbers = #tpu.dot_dimension_numbers<[1], [0], [0], [1], [0, 0, 1, 1], [], []>} : vector<8x32xf32>, vector<32x32xf32>, vector<8x32xf32> -> vector<8x32xf32>
    %c0_35 = arith.constant 0 : index
    %c0_36 = arith.constant 0 : index
    %48 = vector.load %arg12[%c0_35, %c0_36] : memref<1x32xf32, #tpu.memory_space<vmem>>, vector<1x32xf32>
    %49 = vector.broadcast %48 : vector<1x32xf32> to vector<8x32xf32>
    %50 = arith.addf %47, %49 : vector<8x32xf32>
    %51 = arith.negf %50 : vector<8x32xf32>
    %52 = math.exp %51 : vector<8x32xf32>
    %cst_37 = arith.constant 1.000000e+00 : f32
    %53 = vector.broadcast %cst_37 : f32 to vector<8x32xf32>
    %54 = arith.addf %53, %52 : vector<8x32xf32>
    %55 = arith.divf %53, %54 : vector<8x32xf32>
    %c0_38 = arith.constant 0 : index
    %c0_39 = arith.constant 0 : index
    %56 = vector.load %arg15[%c0_38, %c0_39] : memref<8x32xf32, #tpu.memory_space<vmem>>, vector<8x32xf32>
    tpu.vector_store %arg15[%c0_38, %c0_39], %55 {strides = array<i32>} : memref<8x32xf32, #tpu.memory_space<vmem>>, vector<8x32xf32>,
    return
  }
}

module attributes {stable_mosaic.version = 11 : i64} {
  func.func @apply_kernel(%arg0: i32, %arg1: memref<16x32xf32, #tpu.memory_space<vmem>>, %arg2: memref<16x1xi32, #tpu.memory_space<vmem>>, %arg3: memref<1x32xf32, #tpu.memory_space<vmem>>, %arg4: memref<1x32xf32, #tpu.memory_space<vmem>>, %arg5: memref<1x32xf32, #tpu.memory_space<vmem>>, %arg6: memref<1x32xf32, #tpu.memory_space<vmem>>, %arg7: memref<32x128xbf16, #tpu.memory_space<vmem>>, %arg8: memref<1x128xf32, #tpu.memory_space<vmem>>, %arg9: memref<128x32xbf16, #tpu.memory_space<vmem>>, %arg10: memref<1x32xf32, #tpu.memory_space<vmem>>, %arg11: memref<1x32xf32, #tpu.memory_space<vmem>>, %arg12: memref<1x32xf32, #tpu.memory_space<vmem>>, %arg13: memref<8x32xf32, #tpu.memory_space<vmem>>, %arg14: memref<16x32xf32, #tpu.memory_space<vmem>>) attributes {dimension_semantics = [#tpu.dimension_semantics<parallel>], iteration_bounds = array<i64: 1>, scalar_prefetch = 0 : i64, scratch_operands = 0 : i64, tpu.core_type = #tpu.core_type<tc>, window_params = [{transform_indices = @transform_0, window_bounds = array<i64: 16, 32>}, {transform_indices = @transform_1, window_bounds = array<i64: 16, 1>}, {pipeline_mode = #tpu.pipeline_mode<synchronous>, transform_indices = @transform_2, window_bounds = array<i64: 1, 32>}, {pipeline_mode = #tpu.pipeline_mode<synchronous>, transform_indices = @transform_3, window_bounds = array<i64: 1, 32>}, {pipeline_mode = #tpu.pipeline_mode<synchronous>, transform_indices = @transform_4, window_bounds = array<i64: 1, 32>}, {pipeline_mode = #tpu.pipeline_mode<synchronous>, transform_indices = @transform_5, window_bounds = array<i64: 1, 32>}, {pipeline_mode = #tpu.pipeline_mode<synchronous>, transform_indices = @transform_6, window_bounds = array<i64: 32, 128>}, {pipeline_mode = #tpu.pipeline_mode<synchronous>, transform_indices = @transform_7, window_bounds = array<i64: 1, 128>}, {pipeline_mode = #tpu.pipeline_mode<synchronous>, transform_indices = @transform_8, window_bounds = array<i64: 128, 32>}, {pipeline_mode = #tpu.pipeline_mode<synchronous>, transform_indices = @transform_9, window_bounds = array<i64: 1, 32>}, {pipeline_mode = #tpu.pipeline_mode<synchronous>, transform_indices = @transform_10, window_bounds = array<i64: 1, 32>}, {pipeline_mode = #tpu.pipeline_mode<synchronous>, transform_indices = @transform_11, window_bounds = array<i64: 1, 32>}, {pipeline_mode = #tpu.pipeline_mode<synchronous>, transform_indices = @transform_12, window_bounds = array<i64: 8, 32>}, {transform_indices = @transform_13, window_bounds = array<i64: 16, 32>}]} {
    %c0 = arith.constant 0 : index
    %c0_0 = arith.constant 0 : index
    %0 = vector.load %arg1[%c0, %c0_0] : memref<16x32xf32, #tpu.memory_space<vmem>>, vector<16x32xf32>
    %c0_1 = arith.constant 0 : index
    %c0_2 = arith.constant 0 : index
    %1 = vector.load %arg3[%c0_1, %c0_2] : memref<1x32xf32, #tpu.memory_space<vmem>>, vector<1x32xf32>
    %c0_3 = arith.constant 0 : index
    %c0_4 = arith.constant 0 : index
    %2 = vector.load %arg4[%c0_3, %c0_4] : memref<1x32xf32, #tpu.memory_space<vmem>>, vector<1x32xf32>
    %c0_5 = arith.constant 0 : index
    %c0_6 = arith.constant 0 : index
    %3 = vector.load %arg5[%c0_5, %c0_6] : memref<1x32xf32, #tpu.memory_space<vmem>>, vector<1x32xf32>
    %c0_7 = arith.constant 0 : index
    %c0_8 = arith.constant 0 : index
    %4 = vector.load %arg6[%c0_7, %c0_8] : memref<1x32xf32, #tpu.memory_space<vmem>>, vector<1x32xf32>
    %c0_9 = arith.constant 0 : index
    %c0_10 = arith.constant 0 : index
    %5 = vector.load %arg7[%c0_9, %c0_10] : memref<32x128xbf16, #tpu.memory_space<vmem>>, vector<32x128xbf16>
    %c0_11 = arith.constant 0 : index
    %c0_12 = arith.constant 0 : index
    %6 = vector.load %arg8[%c0_11, %c0_12] : memref<1x128xf32, #tpu.memory_space<vmem>>, vector<1x128xf32>
    %c0_13 = arith.constant 0 : index
    %c0_14 = arith.constant 0 : index
    %7 = vector.load %arg9[%c0_13, %c0_14] : memref<128x32xbf16, #tpu.memory_space<vmem>>, vector<128x32xbf16>
    %c0_15 = arith.constant 0 : index
    %c0_16 = arith.constant 0 : index
    %8 = vector.load %arg10[%c0_15, %c0_16] : memref<1x32xf32, #tpu.memory_space<vmem>>, vector<1x32xf32>
    %cst = arith.constant 6.250000e-02 : f32
    %9 = vector.broadcast %cst : f32 to vector<1x32xf32>
    %10 = arith.mulf %1, %9 : vector<1x32xf32>
    %cst_17 = arith.constant 6.250000e-02 : f32
    %11 = vector.broadcast %cst_17 : f32 to vector<1x32xf32>
    %12 = arith.mulf %2, %11 : vector<1x32xf32>
    %13 = arith.mulf %10, %10 : vector<1x32xf32>
    %14 = arith.subf %12, %13 : vector<1x32xf32>
    %cst_18 = arith.constant 9.99999974E-6 : f32
    %15 = vector.broadcast %cst_18 : f32 to vector<1x32xf32>
    %16 = arith.addf %14, %15 : vector<1x32xf32>
    %17 = math.rsqrt %16 : vector<1x32xf32>
    %18 = arith.mulf %3, %17 : vector<1x32xf32>
    %19 = arith.mulf %10, %18 : vector<1x32xf32>
    %20 = arith.subf %4, %19 : vector<1x32xf32>
    %21 = vector.broadcast %18 : vector<1x32xf32> to vector<16x32xf32>
    %22 = arith.mulf %0, %21 : vector<16x32xf32>
    %23 = vector.broadcast %20 : vector<1x32xf32> to vector<16x32xf32>
    %24 = arith.addf %22, %23 : vector<16x32xf32>
    %25 = arith.truncf %24 : vector<16x32xf32> to vector<16x32xbf16>
    %cst_19 = arith.constant dense<0.000000e+00> : vector<16x128xf32>
    %26 = tpu.matmul %25, %5, %cst_19 {dimension_numbers = #tpu.dot_dimension_numbers<[1], [0], [0], [1], [0, 0, 1, 1], [], []>} : vector<16x32xbf16>, vector<32x128xbf16>, vector<16x128xf32> -> vector<16x128xf32>
    %27 = vector.broadcast %6 : vector<1x128xf32> to vector<16x128xf32>
    %28 = arith.addf %26, %27 : vector<16x128xf32>
    %cst_20 = arith.constant 0.000000e+00 : f32
    %29 = vector.broadcast %cst_20 : f32 to vector<16x128xf32>
    %30 = arith.maximumf %28, %29 : vector<16x128xf32>
    %31 = arith.truncf %30 : vector<16x128xf32> to vector<16x128xbf16>
    %cst_21 = arith.constant dense<0.000000e+00> : vector<16x32xf32>
    %32 = tpu.matmul %31, %7, %cst_21 {dimension_numbers = #tpu.dot_dimension_numbers<[1], [0], [0], [1], [0, 0, 1, 1], [], []>} : vector<16x128xbf16>, vector<128x32xbf16>, vector<16x32xf32> -> vector<16x32xf32>
    %33 = vector.broadcast %8 : vector<1x32xf32> to vector<16x32xf32>
    %34 = arith.addf %32, %33 : vector<16x32xf32>
    %c0_22 = arith.constant 0 : index
    %c0_23 = arith.constant 0 : index
    %35 = vector.load %arg11[%c0_22, %c0_23] : memref<1x32xf32, #tpu.memory_space<vmem>>, vector<1x32xf32>
    %36 = vector.broadcast %35 : vector<1x32xf32> to vector<16x32xf32>
    %37 = arith.mulf %34, %36 : vector<16x32xf32>
    %38 = arith.addf %0, %37 : vector<16x32xf32>
    %c0_24 = arith.constant 0 : index
    %c0_25 = arith.constant 0 : index
    %39 = vector.load %arg12[%c0_24, %c0_25] : memref<1x32xf32, #tpu.memory_space<vmem>>, vector<1x32xf32>
    %40 = vector.broadcast %39 : vector<1x32xf32> to vector<16x32xf32>
    %41 = arith.addf %38, %40 : vector<16x32xf32>
    %c0_26 = arith.constant 0 : index
    %c0_27 = arith.constant 0 : index
    %42 = vector.load %arg2[%c0_26, %c0_27] : memref<16x1xi32, #tpu.memory_space<vmem>>, vector<16x1xi32>
    %43 = tpu.iota {dimensions = array<i32: 1>} : vector<16x8xi32>
    %44 = vector.broadcast %42 : vector<16x1xi32> to vector<16x8xi32>
    %45 = arith.cmpi eq, %44, %43 : vector<16x8xi32>
    %46 = arith.extui %45 : vector<16x8xi1> to vector<16x8xi32>
    %47 = arith.sitofp %46 : vector<16x8xi32> to vector<16x8xf32>
    %c0_28 = arith.constant 0 : index
    %c0_29 = arith.constant 0 : index
    %48 = vector.load %arg13[%c0_28, %c0_29] : memref<8x32xf32, #tpu.memory_space<vmem>>, vector<8x32xf32>
    %cst_30 = arith.constant dense<0.000000e+00> : vector<16x32xf32>
    %49 = tpu.matmul %47, %48, %cst_30 {dimension_numbers = #tpu.dot_dimension_numbers<[1], [0], [0], [1], [0, 0, 1, 1], [], []>} : vector<16x8xf32>, vector<8x32xf32>, vector<16x32xf32> -> vector<16x32xf32>
    %50 = arith.mulf %41, %49 : vector<16x32xf32>
    %c0_31 = arith.constant 0 : index
    %c0_32 = arith.constant 0 : index
    %51 = vector.load %arg14[%c0_31, %c0_32] : memref<16x32xf32, #tpu.memory_space<vmem>>, vector<16x32xf32>
    tpu.vector_store %arg14[%c0_31, %c0_32], %50 {strides = array<i32>} : memref<16x32xf32, #tpu.memory_space<vmem>>, vector<16x32xf32>,
    return
  }
  func.func @transform_0(%arg0: i32) -> (i32, i32) {
    %c0_i32 = arith.constant 0 : i32
    %c0_i32_0 = arith.constant 0 : i32
    return %arg0, %c0_i32 : i32, i32
  }
  func.func @transform_1(%arg0: i32) -> (i32, i32) {
    %c0_i32 = arith.constant 0 : i32
    %c0_i32_0 = arith.constant 0 : i32
    return %arg0, %c0_i32 : i32, i32
  }
  func.func @transform_2(%arg0: i32) -> (i32, i32) {
    %c0_i32 = arith.constant 0 : i32
    %c0_i32_0 = arith.constant 0 : i32
    %c0_i32_1 = arith.constant 0 : i32
    return %c0_i32, %c0_i32_0 : i32, i32
  }
  func.func @transform_3(%arg0: i32) -> (i32, i32) {
    %c0_i32 = arith.constant 0 : i32
    %c0_i32_0 = arith.constant 0 : i32
    %c0_i32_1 = arith.constant 0 : i32
    return %c0_i32, %c0_i32_0 : i32, i32
  }
  func.func @transform_4(%arg0: i32) -> (i32, i32) {
    %c0_i32 = arith.constant 0 : i32
    %c0_i32_0 = arith.constant 0 : i32
    %c0_i32_1 = arith.constant 0 : i32
    return %c0_i32, %c0_i32_0 : i32, i32
  }
  func.func @transform_5(%arg0: i32) -> (i32, i32) {
    %c0_i32 = arith.constant 0 : i32
    %c0_i32_0 = arith.constant 0 : i32
    %c0_i32_1 = arith.constant 0 : i32
    return %c0_i32, %c0_i32_0 : i32, i32
  }
  func.func @transform_6(%arg0: i32) -> (i32, i32) {
    %c0_i32 = arith.constant 0 : i32
    %c0_i32_0 = arith.constant 0 : i32
    %c0_i32_1 = arith.constant 0 : i32
    return %c0_i32, %c0_i32_0 : i32, i32
  }
  func.func @transform_7(%arg0: i32) -> (i32, i32) {
    %c0_i32 = arith.constant 0 : i32
    %c0_i32_0 = arith.constant 0 : i32
    %c0_i32_1 = arith.constant 0 : i32
    return %c0_i32, %c0_i32_0 : i32, i32
  }
  func.func @transform_8(%arg0: i32) -> (i32, i32) {
    %c0_i32 = arith.constant 0 : i32
    %c0_i32_0 = arith.constant 0 : i32
    %c0_i32_1 = arith.constant 0 : i32
    return %c0_i32, %c0_i32_0 : i32, i32
  }
  func.func @transform_9(%arg0: i32) -> (i32, i32) {
    %c0_i32 = arith.constant 0 : i32
    %c0_i32_0 = arith.constant 0 : i32
    %c0_i32_1 = arith.constant 0 : i32
    return %c0_i32, %c0_i32_0 : i32, i32
  }
  func.func @transform_10(%arg0: i32) -> (i32, i32) {
    %c0_i32 = arith.constant 0 : i32
    %c0_i32_0 = arith.constant 0 : i32
    %c0_i32_1 = arith.constant 0 : i32
    return %c0_i32, %c0_i32_0 : i32, i32
  }
  func.func @transform_11(%arg0: i32) -> (i32, i32) {
    %c0_i32 = arith.constant 0 : i32
    %c0_i32_0 = arith.constant 0 : i32
    %c0_i32_1 = arith.constant 0 : i32
    return %c0_i32, %c0_i32_0 : i32, i32
  }
  func.func @transform_12(%arg0: i32) -> (i32, i32) {
    %c0_i32 = arith.constant 0 : i32
    %c0_i32_0 = arith.constant 0 : i32
    %c0_i32_1 = arith.constant 0 : i32
    return %c0_i32, %c0_i32_0 : i32, i32
  }
  func.func @transform_13(%arg0: i32) -> (i32, i32) {
    %c0_i32 = arith.constant 0 : i32
    %c0_i32_0 = arith.constant 0 : i32
    return %arg0, %c0_i32 : i32, i32
  }
}

</mosaic_0001>

<llo_original>
// kernel: _update_node_impl.4
$region0: #{_update_node_impl.4}
  #allocation0 [shape = 'u32[]', space=smem, size = 0x4, offset = 0x4, fixed_abs, tag = 'smem constant byte address 0x4 - core index']
  #allocation1 [shape = 'u32[72,128]{1,0:T(1,128)}', space=vmem, size = 0x9000, scoped, tag = 'internal scratch']
  %s0 = inlined_call_operand.hbm [shape: f32[16,32], index: 0, kind: input, shape index: {}]
  %s1 = inlined_call_operand.vmem [shape: f32[1,32], index: 1, kind: output, shape index: {0}]
  %s2 = inlined_call_operand.vmem [shape: f32[1,32], index: 2, kind: output, shape index: {1}]
  %3 = xla_tuple %s1, %s2
  %s4 = sld [smem:[#allocation0]]
  $region30: #{_update_node_impl.4} parent=0
    _
  %s6 = ssub.s32 1, %s4
  %s7 = scalar_select 0, %s6, %s4
  $region1: #{_update_node_impl.4} parent=0
    #allocation2 [shape = 'u8[8192]{0}', space=vmem, size = 0x2000, scoped, tag = 'input window, operand 0, single buffered']
    #allocation3 [shape = 's32[1]{0}', space=sflag, size = 0x4, scoped, tag = 'scoped memory for _update_node_impl.4']
    %8 = vsyncpa [#allocation3], 0
    // Predicated region
    $region2: #{_update_node_impl.4} parent=1 // pred_check
      _
    $region3: #{_update_node_impl.4} parent=1 // pred_check_branch
      %10 = sbr.rel (0) target = $region5
    $region4: #{_update_node_impl.4} parent=1 // pred_region
      %12 = vsyncadd [#allocation3], 0
      %s13 = sshll.u32 %s0, 4
      %s14 = int_to_ptr.hbm [resolvable:$true] %s13
      %s15 = sshll.u32 [#allocation2], 4
      %s16 = int_to_ptr.vmem [resolvable:$true] %s15
      %21 = dma.hbm_to_vmem [thread:$0]  %s14, 256, %s16, [#allocation3], 128, 128, 8
    $region5: #{_update_node_impl.4} parent=1 // pred_fallthru
      _
    // Predicated region
    $region6: #{_update_node_impl.4} parent=1 // pred_check
      _
    $region7: #{_update_node_impl.4} parent=1 // pred_check_branch
      %23 = sbr.rel (0) target = $region9
    $region8: #{_update_node_impl.4} parent=1 // pred_region
      %25 = dma.done [#allocation3], 256
    $region9: #{_update_node_impl.4} parent=1 // pred_fallthru
      _
    %p26 = scmp.eq.s32.totalorder 0, 0
    // Predicated region
    $region10: #{_update_node_impl.4} parent=1 // pred_check
      %p27 = pneg %p26
    $region11: #{_update_node_impl.4} parent=1 // pred_check_branch
      %29 = sbr.rel (%p27) target = $region13
    $region12: #{_update_node_impl.4} parent=1 // pred_region
      %vm30 = vcmask 253952
      %31 = vst.msk [vmem:[%s1] sm:$0x1] %vm30, 0.0
      %32 = vst.msk [vmem:[%s2] sm:$0x1] %vm30, 0.0
    $region13: #{_update_node_impl.4} parent=1 // pred_fallthru
      _
    %s33 = smul.u32 0, 16
    %v34 = vlaneseq
    %v35 = vshrl.u32 %v34, 7
    %v36 = vadd.s32 %v35, 8
    %v37 = vstv %s33
    %v38 = vadd.s32 %v37, %v35
    %v39 = vadd.s32 %v37, %v36
    %vm40 = vcmp.lt.s32.totalorder %v38, 16
    %vm41 = vcmp.lt.s32.totalorder %v39, 16
    %v42 = vld [vmem:[#allocation2] sm:$0xff]
    %v43 = vld [vmem:[#allocation2 + $0x8] sm:$0xff]
    %v44 = vsel %vm40, 1, 0
    %v45 = vsel %vm41, 1, 0
    %vm46 = vcmp.eq.s32.totalorder %v44, 1
    %vm47 = vcmp.eq.s32.totalorder %v45, 1
    %v48 = vsel %vm46, %v42, 0.0
    %v49 = vsel %vm47, %v43, 0.0
    %v50 = vld [vmem:[%s1] sm:$0x1]
    %vm51 = vcmask 261120
    %v52 = vsel %vm51, %v48, 0.0
    %v53 = vsel %vm51, %v49, 0.0
    %v54 = vadd.f32 %v52, %v53
    %v55 = vrot.slane %v54, 4
    %v56 = vadd.f32 %v54, %v55
    %v57 = vrot.slane %v56, 2
    %v58 = vadd.f32 %v56, %v57
    %v59 = vrot.slane %v58, 1
    %v60 = vadd.f32 %v58, %v59
    %v61 = vadd.f32 %v50, %v60
    %vm62 = vcmask 253952
    %63 = vst.msk [vmem:[%s1] sm:$0x1] %vm62, %v61
    %v64 = vld [vmem:[%s2] sm:$0x1]
    %v65 = vmul.f32 %v48, %v48
    %v66 = vmul.f32 %v49, %v49
    %v67 = vsel %vm51, %v65, 0.0
    %v68 = vsel %vm51, %v66, 0.0
    %v69 = vadd.f32 %v67, %v68
    %v70 = vrot.slane %v69, 4
    %v71 = vadd.f32 %v69, %v70
    %v72 = vrot.slane %v71, 2
    %v73 = vadd.f32 %v71, %v72
    %v74 = vrot.slane %v73, 1
    %v75 = vadd.f32 %v73, %v74
    %v76 = vadd.f32 %v64, %v75
    %77 = vst.msk [vmem:[%s2] sm:$0x1] %vm62, %v76
    // Predicated region
    $region14: #{_update_node_impl.4} parent=1 // pred_check
      _
    $region15: #{_update_node_impl.4} parent=1 // pred_check_branch
      %79 = sbr.rel (0) target = $region17
    $region16: #{_update_node_impl.4} parent=1 // pred_region
      _
    $region17: #{_update_node_impl.4} parent=1 // pred_fallthru
      _
    // Predicated region
    $region18: #{_update_node_impl.4} parent=1 // pred_check
      _
    $region19: #{_update_node_impl.4} parent=1 // pred_check_branch
      %81 = sbr.rel (0) target = $region21
    $region20: #{_update_node_impl.4} parent=1 // pred_region
      _
    $region21: #{_update_node_impl.4} parent=1 // pred_fallthru
      _
    // Predicated region
    $region22: #{_update_node_impl.4} parent=1 // pred_check
      _
    $region23: #{_update_node_impl.4} parent=1 // pred_check_branch
      %83 = sbr.rel (0) target = $region25
    $region24: #{_update_node_impl.4} parent=1 // pred_region
      _
    $region25: #{_update_node_impl.4} parent=1 // pred_fallthru
      _
    // Predicated region
    $region26: #{_update_node_impl.4} parent=1 // pred_check
      _
    $region27: #{_update_node_impl.4} parent=1 // pred_check_branch
      %85 = sbr.rel (0) target = $region29
    $region28: #{_update_node_impl.4} parent=1 // pred_region
      _
    $region29: #{_update_node_impl.4} parent=1 // pred_fallthru
      _
    %86 = vsyncpa [#allocation3], 1

// kernel: _update_node_impl.6
$region0: #{_update_node_impl.6}
  #allocation0 [shape = 'u32[]', space=smem, size = 0x4, offset = 0x4, fixed_abs, tag = 'smem constant byte address 0x4 - core index']
  #allocation1 [shape = 'u32[72,128]{1,0:T(1,128)}', space=vmem, size = 0x9000, scoped, tag = 'internal scratch']
  %s0 = inlined_call_operand.vmem [shape: f32[1,32], index: 0, kind: input, shape index: {}]
  %s1 = inlined_call_operand.vmem [shape: f32[1,32], index: 1, kind: input, shape index: {}]
  %s2 = inlined_call_operand.vmem [shape: f32[1,32], index: 2, kind: input, shape index: {}]
  %s3 = inlined_call_operand.vmem [shape: f32[1,32], index: 3, kind: input, shape index: {}]
  %s4 = inlined_call_operand.vmem [shape: f32[8,32], index: 4, kind: input, shape index: {}]
  %s5 = inlined_call_operand.vmem [shape: f32[8,32], index: 5, kind: input, shape index: {}]
  %s6 = inlined_call_operand.vmem [shape: f32[8,1], index: 6, kind: input, shape index: {}]
  %s7 = inlined_call_operand.vmem [shape: f32[32,32], index: 7, kind: input, shape index: {}]
  %s8 = inlined_call_operand.vmem [shape: f32[1,32], index: 8, kind: input, shape index: {}]
  %s9 = inlined_call_operand.vmem [shape: f32[32,32], index: 9, kind: input, shape index: {}]
  %s10 = inlined_call_operand.vmem [shape: f32[1,32], index: 10, kind: input, shape index: {}]
  %s11 = inlined_call_operand.vmem [shape: f32[32,32], index: 11, kind: input, shape index: {}]
  %s12 = inlined_call_operand.vmem [shape: f32[1,32], index: 12, kind: input, shape index: {}]
  %s13 = inlined_call_operand.vmem [shape: f32[1,32], index: 13, kind: output, shape index: {0}]
  %s14 = inlined_call_operand.vmem [shape: f32[1,32], index: 14, kind: output, shape index: {1}]
  %s15 = inlined_call_operand.vmem [shape: f32[8,32], index: 15, kind: output, shape index: {2}]
  %16 = xla_tuple %s13, %s14, %s15
  %s17 = sld [smem:[#allocation0]]
  $region78: #{_update_node_impl.6} parent=0
    _
  %s19 = ssub.s32 1, %s17
  %s20 = scalar_select 0, %s19, %s17
  // Predicated region
  $region2: #{_update_node_impl.6} parent=0 // pred_check
    _
  $region3: #{_update_node_impl.6} parent=0 // pred_check_branch
    %22 = sbr.rel (0) target = $region5
  $region4: #{_update_node_impl.6} parent=0 // pred_region
    _
  $region5: #{_update_node_impl.6} parent=0 // pred_fallthru
    _
  // Predicated region
  $region6: #{_update_node_impl.6} parent=0 // pred_check
    _
  $region7: #{_update_node_impl.6} parent=0 // pred_check_branch
    %24 = sbr.rel (0) target = $region9
  $region8: #{_update_node_impl.6} parent=0 // pred_region
    _
  $region9: #{_update_node_impl.6} parent=0 // pred_fallthru
    _
  // Predicated region
  $region10: #{_update_node_impl.6} parent=0 // pred_check
    _
  $region11: #{_update_node_impl.6} parent=0 // pred_check_branch
    %26 = sbr.rel (0) target = $region13
  $region12: #{_update_node_impl.6} parent=0 // pred_region
    _
  $region13: #{_update_node_impl.6} parent=0 // pred_fallthru
    _
  // Predicated region
  $region14: #{_update_node_impl.6} parent=0 // pred_check
    _
  $region15: #{_update_node_impl.6} parent=0 // pred_check_branch
    %28 = sbr.rel (0) target = $region17
  $region16: #{_update_node_impl.6} parent=0 // pred_region
    _
  $region17: #{_update_node_impl.6} parent=0 // pred_fallthru
    _
  // Predicated region
  $region18: #{_update_node_impl.6} parent=0 // pred_check
    _
  $region19: #{_update_node_impl.6} parent=0 // pred_check_branch
    %30 = sbr.rel (0) target = $region21
  $region20: #{_update_node_impl.6} parent=0 // pred_region
    _
  $region21: #{_update_node_impl.6} parent=0 // pred_fallthru
    _
  // Predicated region
  $region22: #{_update_node_impl.6} parent=0 // pred_check
    _
  $region23: #{_update_node_impl.6} parent=0 // pred_check_branch
    %32 = sbr.rel (0) target = $region25
  $region24: #{_update_node_impl.6} parent=0 // pred_region
    _
  $region25: #{_update_node_impl.6} parent=0 // pred_fallthru
    _
  // Predicated region
  $region26: #{_update_node_impl.6} parent=0 // pred_check
    _
  $region27: #{_update_node_impl.6} parent=0 // pred_check_branch
    %34 = sbr.rel (0) target = $region29
  $region28: #{_update_node_impl.6} parent=0 // pred_region
    _
  $region29: #{_update_node_impl.6} parent=0 // pred_fallthru
    _
  // Predicated region
  $region30: #{_update_node_impl.6} parent=0 // pred_check
    _
  $region31: #{_update_node_impl.6} parent=0 // pred_check_branch
    %36 = sbr.rel (0) target = $region33
  $region32: #{_update_node_impl.6} parent=0 // pred_region
    _
  $region33: #{_update_node_impl.6} parent=0 // pred_fallthru
    _
  // Predicated region
  $region34: #{_update_node_impl.6} parent=0 // pred_check
    _
  $region35: #{_update_node_impl.6} parent=0 // pred_check_branch
    %38 = sbr.rel (0) target = $region37
  $region36: #{_update_node_impl.6} parent=0 // pred_region
    _
  $region37: #{_update_node_impl.6} parent=0 // pred_fallthru
    _
  // Predicated region
  $region38: #{_update_node_impl.6} parent=0 // pred_check
    _
  $region39: #{_update_node_impl.6} parent=0 // pred_check_branch
    %40 = sbr.rel (0) target = $region41
  $region40: #{_update_node_impl.6} parent=0 // pred_region
    _
  $region41: #{_update_node_impl.6} parent=0 // pred_fallthru
    _
  // Predicated region
  $region42: #{_update_node_impl.6} parent=0 // pred_check
    _
  $region43: #{_update_node_impl.6} parent=0 // pred_check_branch
    %42 = sbr.rel (0) target = $region45
  $region44: #{_update_node_impl.6} parent=0 // pred_region
    _
  $region45: #{_update_node_impl.6} parent=0 // pred_fallthru
    _
  // Predicated region
  $region46: #{_update_node_impl.6} parent=0 // pred_check
    _
  $region47: #{_update_node_impl.6} parent=0 // pred_check_branch
    %44 = sbr.rel (0) target = $region49
  $region48: #{_update_node_impl.6} parent=0 // pred_region
    _
  $region49: #{_update_node_impl.6} parent=0 // pred_fallthru
    _
  // Predicated region
  $region50: #{_update_node_impl.6} parent=0 // pred_check
    _
  $region51: #{_update_node_impl.6} parent=0 // pred_check_branch
    %46 = sbr.rel (0) target = $region53
  $region52: #{_update_node_impl.6} parent=0 // pred_region
    _
  $region53: #{_update_node_impl.6} parent=0 // pred_fallthru
    _
  %v47 = vld [vmem:[%s0] sm:$0x1]
  %v48 = vmul.f32 %v47, 0.0625
  %v49 = vld [vmem:[%s1] sm:$0x1]
  %v50 = vmul.f32 %v49, 0.0625
  %v51 = vmul.f32 %v48, %v48
  %v52 = vsub.f32 %v50, %v51
  %v53 = vld [vmem:[%s2] sm:$0x1]
  %v54 = vadd.f32 %v52, 1e-05
  %v55 = vrsqrt.pop %v54
  %v56 = vmul.f32 %v55, %v54
  %v57 = vmul.f32 %v56, %v55
  %v58 = vmul.f32 0.5, %v57
  %v59 = vsub.f32 1.5, %v58
  %v60 = vmul.f32 %v55, %v59
  %vm61 = vweird.f32 %v54
  %vm62 = vweird.f32 %v55
  %vm63 = vmor %vm61, %vm62
  %v64 = vsel %vm63, %v55, %v60
  %v65 = vmul.f32 %v53, %v64
  %v66 = vld [vmem:[%s3] sm:$0x1]
  %v67 = vmul.f32 %v48, %v65
  %v68 = vsub.f32 %v66, %v67
  %vm69 = vcmask 253952
  %70 = vst.msk [vmem:[%s13] sm:$0x1] %vm69, %v65
  %71 = vst.msk [vmem:[%s14] sm:$0x1] %vm69, %v68
  %v72 = vld [vmem:[%s6] sm:$0xff]
  %v73 = vmax.f32 %v72, 1.0
  %v74 = vld [vmem:[%s4] sm:$0xff]
  %v75 = vld [vmem:[%s5] sm:$0xff]
  %v77 = vperm.slane %v65, 0
  %v79 = vmul.f32 %v75, %v77
  %v80 = vadd.f32 %v74, %v79
  %82 = vset.pattern.permute.xlu0 0
  %83 = vperm.xlu0 %82, %v72
  %v84 = vpop.permute.xlu0 %83
  %v87 = vperm.slane %v68, 0
  %v89 = vmul.f32 %v84, %v87
  %v90 = vadd.f32 %v80, %v89
  %92 = vset.pattern.permute.xlu0 0
  %93 = vperm.xlu0 %92, %v73
  %v94 = vpop.permute.xlu0 %93
  %v96 = vrcp.pop %v94
  %v97 = vmul.f32 %v94, %v96
  %v98 = vsub.f32 1.0, %v97
  %v99 = vmul.f32 %v96, %v98
  %v100 = vadd.f32 %v96, %v99
  %vm101 = vweird.f32 %v94
  %vm102 = vweird.f32 %v96
  %vm103 = vmor %vm101, %vm102
  %v104 = vsel %vm103, %v96, %v100
  %v105 = vand.u32 2147483647, %v94
  %vm106 = vcmp.eq.f32.partialorder %v105, 8.507059e+37
  %v107 = vand.u32 %v94, 2147483648
  %v108 = vor.u32 1.1754944e-38, %v107
  %v109 = vsel %vm106, %v108, %v104
  %v110 = vmul.f32 %v90, %v109
  %v111 = vld [vmem:[%s7] sm:$0xff]
  %v112 = vld [vmem:[%s7 + $0x8] sm:$0xff]
  %v113 = vld [vmem:[%s7 + $0x10] sm:$0xff]
  %v114 = vld [vmem:[%s7 + $0x18] sm:$0xff]
  %v115 = vld [vmem:[%s8] sm:$0x1]
  %v117 = vperm.slane %v115, 0
  %vm119 = vcmask 261120
  %v121 = vsel %vm119, %v110, 0
  %123 = vmatpush.msra.mxu0 0.0
  %124 = vmatpush.msra.mxu0 0.0
  %125 = vmatpush.msra.mxu0 0.0
  %126 = vmatpush.msra.mxu0 0.0
  %127 = vmatpush.msra.mxu0 0.0
  %128 = vmatpush.msra.mxu0 0.0
  %129 = vmatpush.msra.mxu0 0.0
  %130 = vmatpush.msra.mxu0 0.0
  %131 = vmatpush.msra.mxu0 0.0
  %132 = vmatpush.msra.mxu0 0.0
  %133 = vmatpush.msra.mxu0 0.0
  %134 = vmatpush.msra.mxu0 0.0
  %135 = vmatpush.msra.mxu0 %v114
  %136 = vmatpush.msra.mxu0 %v113
  %137 = vmatpush.msra.mxu0 %v112
  %138 = vmatpush.msra.mxu0 %v111
  %139 = vmatmul.f32.gmra.mxu0 %v121
  %v140 = vpop.f32.mrf.mxu0
  %v141 = vadd.f32 %v117, %v140
  %142 = vdwg.mxu0
  %v143 = vmax.f32 %v141, 0.0
  %v144 = vld [vmem:[%s9] sm:$0xff]
  %v145 = vld [vmem:[%s9 + $0x8] sm:$0xff]
  %v146 = vld [vmem:[%s9 + $0x10] sm:$0xff]
  %v147 = vld [vmem:[%s9 + $0x18] sm:$0xff]
  %v148 = vld [vmem:[%s10] sm:$0x1]
  %v150 = vperm.slane %v148, 0
  %v153 = vsel %vm119, %v143, 0
  %155 = vmatpush.msra.mxu0 0.0
  %156 = vmatpush.msra.mxu0 0.0
  %157 = vmatpush.msra.mxu0 0.0
  %158 = vmatpush.msra.mxu0 0.0
  %159 = vmatpush.msra.mxu0 0.0
  %160 = vmatpush.msra.mxu0 0.0
  %161 = vmatpush.msra.mxu0 0.0
  %162 = vmatpush.msra.mxu0 0.0
  %163 = vmatpush.msra.mxu0 0.0
  %164 = vmatpush.msra.mxu0 0.0
  %165 = vmatpush.msra.mxu0 0.0
  %166 = vmatpush.msra.mxu0 0.0
  %167 = vmatpush.msra.mxu0 %v147
  %168 = vmatpush.msra.mxu0 %v146
  %169 = vmatpush.msra.mxu0 %v145
  %170 = vmatpush.msra.mxu0 %v144
  %171 = vmatmul.f32.gmra.mxu0 %v153
  %v172 = vpop.f32.mrf.mxu0
  %v173 = vadd.f32 %v150, %v172
  %174 = vdwg.mxu0
  %v175 = vmax.f32 %v173, 0.0
  %v176 = vld [vmem:[%s11] sm:$0xff]
  %v177 = vld [vmem:[%s11 + $0x8] sm:$0xff]
  %v178 = vld [vmem:[%s11 + $0x10] sm:$0xff]
  %v179 = vld [vmem:[%s11 + $0x18] sm:$0xff]
  %v180 = vld [vmem:[%s12] sm:$0x1]
  %v182 = vperm.slane %v180, 0
  %v185 = vsel %vm119, %v175, 0
  %187 = vmatpush.msra.mxu0 0.0
  %188 = vmatpush.msra.mxu0 0.0
  %189 = vmatpush.msra.mxu0 0.0
  %190 = vmatpush.msra.mxu0 0.0
  %191 = vmatpush.msra.mxu0 0.0
  %192 = vmatpush.msra.mxu0 0.0
  %193 = vmatpush.msra.mxu0 0.0
  %194 = vmatpush.msra.mxu0 0.0
  %195 = vmatpush.msra.mxu0 0.0
  %196 = vmatpush.msra.mxu0 0.0
  %197 = vmatpush.msra.mxu0 0.0
  %198 = vmatpush.msra.mxu0 0.0
  %199 = vmatpush.msra.mxu0 %v179
  %200 = vmatpush.msra.mxu0 %v178
  %201 = vmatpush.msra.mxu0 %v177
  %202 = vmatpush.msra.mxu0 %v176
  %203 = vmatmul.f32.gmra.mxu0 %v185
  %v204 = vpop.f32.mrf.mxu0
  %v205 = vadd.f32 %v182, %v204
  %206 = vdwg.mxu0
  %v207 = vxor.u32 %v205, 2147483648
  %v208 = vmul.f32 %v207, 1.442695
  %v209 = vpow.pop %v208
  %v210 = vadd.f32 %v209, 1.0
  %v211 = vrcp.pop %v210
  %v212 = vmul.f32 %v210, %v211
  %v213 = vsub.f32 1.0, %v212
  %v214 = vmul.f32 %v211, %v213
  %v215 = vadd.f32 %v211, %v214
  %vm216 = vweird.f32 %v210
  %vm217 = vweird.f32 %v211
  %vm218 = vmor %vm216, %vm217
  %v219 = vsel %vm218, %v211, %v215
  %v220 = vand.u32 2147483647, %v210
  %vm221 = vcmp.eq.f32.partialorder %v220, 8.507059e+37
  %v222 = vand.u32 %v210, 2147483648
  %v223 = vor.u32 1.1754944e-38, %v222
  %v224 = vsel %vm221, %v223, %v219
  %v225 = vmul.f32 1.0, %v224
  %226 = vst.msk [vmem:[%s15] sm:$0xff] %vm119, %v225
  // Predicated region
  $region54: #{_update_node_impl.6} parent=0 // pred_check
    _
  $region55: #{_update_node_impl.6} parent=0 // pred_check_branch
    %228 = sbr.rel (0) target = $region57
  $region56: #{_update_node_impl.6} parent=0 // pred_region
    _
  $region57: #{_update_node_impl.6} parent=0 // pred_fallthru
    _
  // Predicated region
  $region58: #{_update_node_impl.6} parent=0 // pred_check
    _
  $region59: #{_update_node_impl.6} parent=0 // pred_check_branch
    %230 = sbr.rel (0) target = $region61
  $region60: #{_update_node_impl.6} parent=0 // pred_region
    _
  $region61: #{_update_node_impl.6} parent=0 // pred_fallthru
    _
  // Predicated region
  $region62: #{_update_node_impl.6} parent=0 // pred_check
    _
  $region63: #{_update_node_impl.6} parent=0 // pred_check_branch
    %232 = sbr.rel (0) target = $region65
  $region64: #{_update_node_impl.6} parent=0 // pred_region
    _
  $region65: #{_update_node_impl.6} parent=0 // pred_fallthru
    _
  // Predicated region
  $region66: #{_update_node_impl.6} parent=0 // pred_check
    _
  $region67: #{_update_node_impl.6} parent=0 // pred_check_branch
    %234 = sbr.rel (0) target = $region69
  $region68: #{_update_node_impl.6} parent=0 // pred_region
    _
  $region69: #{_update_node_impl.6} parent=0 // pred_fallthru
    _
  // Predicated region
  $region70: #{_update_node_impl.6} parent=0 // pred_check
    _
  $region71: #{_update_node_impl.6} parent=0 // pred_check_branch
    %236 = sbr.rel (0) target = $region73
  $region72: #{_update_node_impl.6} parent=0 // pred_region
    _
  $region73: #{_update_node_impl.6} parent=0 // pred_fallthru
    _
  // Predicated region
  $region74: #{_update_node_impl.6} parent=0 // pred_check
    _
  $region75: #{_update_node_impl.6} parent=0 // pred_check_branch
    %238 = sbr.rel (0) target = $region77
  $region76: #{_update_node_impl.6} parent=0 // pred_region
    _
  $region77: #{_update_node_impl.6} parent=0 // pred_fallthru
    _

// kernel: _update_node_impl.5
$region0: #{_update_node_impl.5}
  #allocation0 [shape = 'u32[]', space=smem, size = 0x4, offset = 0x4, fixed_abs, tag = 'smem constant byte address 0x4 - core index']
  #allocation1 [shape = 'u32[72,128]{1,0:T(1,128)}', space=vmem, size = 0x9000, scoped, tag = 'internal scratch']
  %s0 = inlined_call_operand.vmem [shape: f32[16,32], index: 0, kind: input, shape index: {}]
  %s1 = inlined_call_operand.vmem [shape: s32[1,16], index: 1, kind: input, shape index: {}]
  %s2 = inlined_call_operand.vmem [shape: f32[1,32], index: 2, kind: input, shape index: {}]
  %s3 = inlined_call_operand.vmem [shape: f32[1,32], index: 3, kind: input, shape index: {}]
  %s4 = inlined_call_operand.vmem [shape: f32[1,32], index: 4, kind: input, shape index: {}]
  %s5 = inlined_call_operand.vmem [shape: f32[1,32], index: 5, kind: input, shape index: {}]
  %s6 = inlined_call_operand.vmem [shape: bf16[32,128], index: 6, kind: input, shape index: {}]
  %s7 = inlined_call_operand.vmem [shape: f32[1,128], index: 7, kind: input, shape index: {}]
  %s8 = inlined_call_operand.vmem [shape: bf16[128,32], index: 8, kind: input, shape index: {}]
  %s9 = inlined_call_operand.vmem [shape: f32[1,32], index: 9, kind: input, shape index: {}]
  %s10 = inlined_call_operand.vmem [shape: f32[1,32], index: 10, kind: output, shape index: {0}]
  %s11 = inlined_call_operand.vmem [shape: f32[1,32], index: 11, kind: output, shape index: {1}]
  %s12 = inlined_call_operand.vmem [shape: f32[8,32], index: 12, kind: output, shape index: {2}]
  %s13 = inlined_call_operand.vmem [shape: f32[8,32], index: 13, kind: output, shape index: {3}]
  %s14 = inlined_call_operand.vmem [shape: f32[8,1], index: 14, kind: output, shape index: {4}]
  %15 = xla_tuple %s10, %s11, %s12, %s13, %s14
  %s16 = sld [smem:[#allocation0]]
  $region86: #{_update_node_impl.5} parent=0
    _
  %s18 = ssub.s32 1, %s16
  %s19 = scalar_select 0, %s18, %s16
  // Predicated region
  $region2: #{_update_node_impl.5} parent=0 // pred_check
    _
  $region3: #{_update_node_impl.5} parent=0 // pred_check_branch
    %21 = sbr.rel (0) target = $region5
  $region4: #{_update_node_impl.5} parent=0 // pred_region
    _
  $region5: #{_update_node_impl.5} parent=0 // pred_fallthru
    _
  // Predicated region
  $region6: #{_update_node_impl.5} parent=0 // pred_check
    _
  $region7: #{_update_node_impl.5} parent=0 // pred_check_branch
    %23 = sbr.rel (0) target = $region9
  $region8: #{_update_node_impl.5} parent=0 // pred_region
    _
  $region9: #{_update_node_impl.5} parent=0 // pred_fallthru
    _
  // Predicated region
  $region10: #{_update_node_impl.5} parent=0 // pred_check
    _
  $region11: #{_update_node_impl.5} parent=0 // pred_check_branch
    %25 = sbr.rel (0) target = $region13
  $region12: #{_update_node_impl.5} parent=0 // pred_region
    _
  $region13: #{_update_node_impl.5} parent=0 // pred_fallthru
    _
  // Predicated region
  $region14: #{_update_node_impl.5} parent=0 // pred_check
    _
  $region15: #{_update_node_impl.5} parent=0 // pred_check_branch
    %27 = sbr.rel (0) target = $region17
  $region16: #{_update_node_impl.5} parent=0 // pred_region
    _
  $region17: #{_update_node_impl.5} parent=0 // pred_fallthru
    _
  // Predicated region
  $region18: #{_update_node_impl.5} parent=0 // pred_check
    _
  $region19: #{_update_node_impl.5} parent=0 // pred_check_branch
    %29 = sbr.rel (0) target = $region21
  $region20: #{_update_node_impl.5} parent=0 // pred_region
    _
  $region21: #{_update_node_impl.5} parent=0 // pred_fallthru
    _
  // Predicated region
  $region22: #{_update_node_impl.5} parent=0 // pred_check
    _
  $region23: #{_update_node_impl.5} parent=0 // pred_check_branch
    %31 = sbr.rel (0) target = $region25
  $region24: #{_update_node_impl.5} parent=0 // pred_region
    _
  $region25: #{_update_node_impl.5} parent=0 // pred_fallthru
    _
  // Predicated region
  $region26: #{_update_node_impl.5} parent=0 // pred_check
    _
  $region27: #{_update_node_impl.5} parent=0 // pred_check_branch
    %33 = sbr.rel (0) target = $region29
  $region28: #{_update_node_impl.5} parent=0 // pred_region
    _
  $region29: #{_update_node_impl.5} parent=0 // pred_fallthru
    _
  // Predicated region
  $region30: #{_update_node_impl.5} parent=0 // pred_check
    _
  $region31: #{_update_node_impl.5} parent=0 // pred_check_branch
    %35 = sbr.rel (0) target = $region33
  $region32: #{_update_node_impl.5} parent=0 // pred_region
    _
  $region33: #{_update_node_impl.5} parent=0 // pred_fallthru
    _
  // Predicated region
  $region34: #{_update_node_impl.5} parent=0 // pred_check
    _
  $region35: #{_update_node_impl.5} parent=0 // pred_check_branch
    %37 = sbr.rel (0) target = $region37
  $region36: #{_update_node_impl.5} parent=0 // pred_region
    _
  $region37: #{_update_node_impl.5} parent=0 // pred_fallthru
    _
  // Predicated region
  $region38: #{_update_node_impl.5} parent=0 // pred_check
    _
  $region39: #{_update_node_impl.5} parent=0 // pred_check_branch
    %39 = sbr.rel (0) target = $region41
  $region40: #{_update_node_impl.5} parent=0 // pred_region
    _
  $region41: #{_update_node_impl.5} parent=0 // pred_fallthru
    _
  %p41 = scmp.eq.s32.totalorder 0, 0
  // Predicated region
  $region42: #{_update_node_impl.5} parent=0 // pred_check
    %p42 = pneg %p41
  $region43: #{_update_node_impl.5} parent=0 // pred_check_branch
    %44 = sbr.rel (%p42) target = $region45
  $region44: #{_update_node_impl.5} parent=0 // pred_region
    %vm45 = vcmask 253952
    %46 = vst.msk [vmem:[%s10] sm:$0x1] %vm45, 0.0
    %47 = vst.msk [vmem:[%s11] sm:$0x1] %vm45, 0.0
    %vm48 = vcmask 261120
    %49 = vst.msk [vmem:[%s12] sm:$0xff] %vm48, 0.0
    %50 = vst.msk [vmem:[%s13] sm:$0xff] %vm48, 0.0
    %vm51 = vcmask 7168
    %52 = vst.msk [vmem:[%s14] sm:$0xff] %vm51, 0.0
  $region45: #{_update_node_impl.5} parent=0 // pred_fallthru
    _
  %s53 = smul.u32 0, 16
  %v54 = vlaneseq
  %v55 = vshrl.u32 %v54, 7
  %v56 = vadd.s32 %v55, 8
  %v57 = vstv %s53
  %v58 = vadd.s32 %v57, %v55
  %v59 = vadd.s32 %v57, %v56
  %vm60 = vcmp.lt.s32.totalorder %v58, 16
  %vm61 = vcmp.lt.s32.totalorder %v59, 16
  %v62 = vld [vmem:[%s0] sm:$0xff]
  %v63 = vld [vmem:[%s0 + $0x8] sm:$0xff]
  %v64 = vsel %vm60, 1, 0
  %v65 = vsel %vm61, 1, 0
  %vm66 = vcmp.eq.s32.totalorder %v64, 1
  %vm67 = vcmp.eq.s32.totalorder %v65, 1
  %v68 = vsel %vm66, %v62, 0.0
  %v69 = vsel %vm67, %v63, 0.0
  %v70 = vld [vmem:[%s2] sm:$0x1]
  %v71 = vld [vmem:[%s3] sm:$0x1]
  %v72 = vld [vmem:[%s4] sm:$0x1]
  %v73 = vld [vmem:[%s5] sm:$0x1]
  %v74 = vld [vmem:[%s6] sm:$0xf]
  %v75 = vld [vmem:[%s6 + $0x4] sm:$0xf]
  %v76 = vld [vmem:[%s6 + $0x8] sm:$0xf]
  %v77 = vld [vmem:[%s6 + $0xc] sm:$0xf]
  %v78 = vld [vmem:[%s7] sm:$0x1]
  %v79 = vld [vmem:[%s8] sm:$0xf]
  %v80 = vld [vmem:[%s8 + $0x4] sm:$0xf]
  %v81 = vld [vmem:[%s8 + $0x8] sm:$0xf]
  %v82 = vld [vmem:[%s8 + $0xc] sm:$0xf]
  %v83 = vld [vmem:[%s8 + $0x10] sm:$0xf]
  %v84 = vld [vmem:[%s8 + $0x14] sm:$0xf]
  %v85 = vld [vmem:[%s8 + $0x18] sm:$0xf]
  %v86 = vld [vmem:[%s8 + $0x1c] sm:$0xf]
  %v87 = vld [vmem:[%s8 + $0x20] sm:$0xf]
  %v88 = vld [vmem:[%s8 + $0x24] sm:$0xf]
  %v89 = vld [vmem:[%s8 + $0x28] sm:$0xf]
  %v90 = vld [vmem:[%s8 + $0x2c] sm:$0xf]
  %v91 = vld [vmem:[%s8 + $0x30] sm:$0xf]
  %v92 = vld [vmem:[%s8 + $0x34] sm:$0xf]
  %v93 = vld [vmem:[%s8 + $0x38] sm:$0xf]
  %v94 = vld [vmem:[%s8 + $0x3c] sm:$0xf]
  %v95 = vld [vmem:[%s9] sm:$0x1]
  %v96 = vmul.f32 %v70, 0.0625
  %v97 = vmul.f32 %v71, 0.0625
  %v98 = vmul.f32 %v96, %v96
  %v99 = vsub.f32 %v97, %v98
  %v100 = vadd.f32 %v99, 1e-05
  %v101 = vrsqrt.pop %v100
  %v102 = vmul.f32 %v101, %v100
  %v103 = vmul.f32 %v102, %v101
  %v104 = vmul.f32 0.5, %v103
  %v105 = vsub.f32 1.5, %v104
  %v106 = vmul.f32 %v101, %v105
  %vm107 = vweird.f32 %v100
  %vm108 = vweird.f32 %v101
  %vm109 = vmor %vm107, %vm108
  %v110 = vsel %vm109, %v101, %v106
  %v111 = vmul.f32 %v72, %v110
  %v112 = vmul.f32 %v96, %v111
  %v113 = vsub.f32 %v73, %v112
  %v115 = vperm.slane %v111, 0
  %v117 = vmul.f32 %v68, %v115
  %v118 = vmul.f32 %v69, %v115
  %v120 = vperm.slane %v113, 0
  %v122 = vadd.f32 %v117, %v120
  %v123 = vadd.f32 %v118, %v120
  %v124 = vpack.c.bf16 %v123, %v122
  %v126 = vperm.slane %v78, 0
  %v132 = vunpack.c.l.b16 %v74
  %v133 = vunpack.c.l.b16 %v75
  %v134 = vunpack.c.l.b16 %v76
  %v135 = vunpack.c.l.b16 %v77
  %v136 = vpack.c.b16 %v133, %v132
  %v137 = vpack.c.b16 %v135, %v134
  %vm140 = vcmask 261120
  %v142 = vsel %vm140, %v124, 0
  %144 = vmatpush.bf16.msra.mxu0 0
  %145 = vmatpush.bf16.msra.mxu0 0
  %146 = vmatpush.bf16.msra.mxu0 0
  %147 = vmatpush.bf16.msra.mxu0 0
  %148 = vmatpush.bf16.msra.mxu0 0
  %149 = vmatpush.bf16.msra.mxu0 0
  %150 = vmatpush.bf16.msra.mxu0 %v137
  %151 = vmatpush.bf16.msra.mxu0 %v136
  %152 = vmatmul.bf16.gmra.mxu0 %v142
  %v153 = vpop.f32.mrf.mxu0
  %v154 = vadd.f32 %v126, %v153
  %v155 = vpop.f32.mrf.mxu0
  %v156 = vadd.f32 %v126, %v155
  %157 = vdwg.mxu0
  %v158 = vmax.f32 %v154, 0.0
  %v159 = vmax.f32 %v156, 0.0
  %v160 = vpack.c.bf16 %v159, %v158
  %v162 = vperm.slane %v95, 0
  %v180 = vunpack.c.l.b16 %v79
  %v181 = vunpack.c.l.b16 %v80
  %v182 = vunpack.c.l.b16 %v81
  %v183 = vunpack.c.l.b16 %v82
  %v184 = vunpack.c.l.b16 %v83
  %v185 = vunpack.c.l.b16 %v84
  %v186 = vunpack.c.l.b16 %v85
  %v187 = vunpack.c.l.b16 %v86
  %v188 = vunpack.c.l.b16 %v87
  %v189 = vunpack.c.l.b16 %v88
  %v190 = vunpack.c.l.b16 %v89
  %v191 = vunpack.c.l.b16 %v90
  %v192 = vunpack.c.l.b16 %v91
  %v193 = vunpack.c.l.b16 %v92
  %v194 = vunpack.c.l.b16 %v93
  %v195 = vunpack.c.l.b16 %v94
  %v196 = vpack.c.b16 %v181, %v180
  %v197 = vpack.c.b16 %v183, %v182
  %v198 = vpack.c.b16 %v185, %v184
  %v199 = vpack.c.b16 %v187, %v186
  %v200 = vpack.c.b16 %v189, %v188
  %v201 = vpack.c.b16 %v191, %v190
  %v202 = vpack.c.b16 %v193, %v192
  %v203 = vpack.c.b16 %v195, %v194
  %212 = vmatpush.bf16.msra.mxu0 %v203
  %213 = vmatpush.bf16.msra.mxu0 %v202
  %214 = vmatpush.bf16.msra.mxu0 %v201
  %215 = vmatpush.bf16.msra.mxu0 %v200
  %216 = vmatpush.bf16.msra.mxu0 %v199
  %217 = vmatpush.bf16.msra.mxu0 %v198
  %218 = vmatpush.bf16.msra.mxu0 %v197
  %219 = vmatpush.bf16.msra.mxu0 %v196
  %220 = vmatmul.bf16.gmra.mxu0 %v160
  %v221 = vpop.f32.mrf.mxu0
  %v222 = vadd.f32 %v162, %v221
  %v223 = vpop.f32.mrf.mxu0
  %v224 = vadd.f32 %v162, %v223
  %225 = vdwg.mxu0
  %v226 = vsel %vm66, %v222, 0.0
  %v227 = vsel %vm67, %v224, 0.0
  %v228 = vld [vmem:[%s10] sm:$0x1]
  %v229 = vsel %vm140, %v226, 0.0
  %v230 = vsel %vm140, %v227, 0.0
  %v231 = vadd.f32 %v229, %v230
  %v232 = vrot.slane %v231, 4
  %v233 = vadd.f32 %v231, %v232
  %v234 = vrot.slane %v233, 2
  %v235 = vadd.f32 %v233, %v234
  %v236 = vrot.slane %v235, 1
  %v237 = vadd.f32 %v235, %v236
  %v238 = vadd.f32 %v228, %v237
  %vm239 = vcmask 253952
  %240 = vst.msk [vmem:[%s10] sm:$0x1] %vm239, %v238
  %v241 = vld [vmem:[%s11] sm:$0x1]
  %v242 = vmul.f32 %v226, %v226
  %v243 = vmul.f32 %v227, %v227
  %v244 = vsel %vm140, %v242, 0.0
  %v245 = vsel %vm140, %v243, 0.0
  %v246 = vadd.f32 %v244, %v245
  %v247 = vrot.slane %v246, 4
  %v248 = vadd.f32 %v246, %v247
  %v249 = vrot.slane %v248, 2
  %v250 = vadd.f32 %v248, %v249
  %v251 = vrot.slane %v250, 1
  %v252 = vadd.f32 %v250, %v251
  %v253 = vadd.f32 %v241, %v252
  %254 = vst.msk [vmem:[%s11] sm:$0x1] %vm239, %v253
  %v255 = vlaneseq
  %v256 = vand.u32 %v255, 127
  %v257 = vadd.s32 %v57, %v256
  %v258 = vld [vmem:[%s1] sm:$0x1]
  %v259 = vperm.slane %v258, 0
  %vm260 = vcmp.eq.s32.totalorder %v55, %v259
  %vm261 = vcmp.lt.s32.totalorder %v257, 16
  %v262 = vsel %vm261, 1, 0
  %vm263 = vcmp.eq.s32.totalorder %v262, 1
  %vm264 = vmand %vm260, %vm263
  %v265 = vsel %vm264, 1.0, 0.0
  %v266 = vld [vmem:[%s12] sm:$0xff]
  %vm267 = vcmask 130048
  %v269 = vsel %vm267, %v265, 0
  %271 = vmatpush.msra.mxu0 0.0
  %272 = vmatpush.msra.mxu0 0.0
  %273 = vmatpush.msra.mxu0 0.0
  %274 = vmatpush.msra.mxu0 0.0
  %275 = vmatpush.msra.mxu0 0.0
  %276 = vmatpush.msra.mxu0 0.0
  %277 = vmatpush.msra.mxu0 0.0
  %278 = vmatpush.msra.mxu0 0.0
  %279 = vmatpush.msra.mxu0 0.0
  %280 = vmatpush.msra.mxu0 0.0
  %281 = vmatpush.msra.mxu0 0.0
  %282 = vmatpush.msra.mxu0 0.0
  %283 = vmatpush.msra.mxu0 0.0
  %284 = vmatpush.msra.mxu0 0.0
  %285 = vmatpush.msra.mxu0 %v69
  %286 = vmatpush.msra.mxu0 %v68
  %287 = vmatmul.f32.gmra.mxu0 %v269
  %v288 = vpop.f32.mrf.mxu0
  %v289 = vadd.f32 0.0, %v288
  %290 = vdwg.mxu0
  %v291 = vadd.f32 %v266, %v289
  %292 = vst.msk [vmem:[%s12] sm:$0xff] %vm140, %v291
  %v293 = vld [vmem:[%s13] sm:$0xff]
  %294 = vmatpush.msra.mxu0 0.0
  %295 = vmatpush.msra.mxu0 0.0
  %296 = vmatpush.msra.mxu0 0.0
  %297 = vmatpush.msra.mxu0 0.0
  %298 = vmatpush.msra.mxu0 0.0
  %299 = vmatpush.msra.mxu0 0.0
  %300 = vmatpush.msra.mxu0 0.0
  %301 = vmatpush.msra.mxu0 0.0
  %302 = vmatpush.msra.mxu0 0.0
  %303 = vmatpush.msra.mxu0 0.0
  %304 = vmatpush.msra.mxu0 0.0
  %305 = vmatpush.msra.mxu0 0.0
  %306 = vmatpush.msra.mxu0 0.0
  %307 = vmatpush.msra.mxu0 0.0
  %308 = vmatpush.msra.mxu0 %v227
  %309 = vmatpush.msra.mxu0 %v226
  %310 = vmatmul.f32.gmra.mxu0 %v269
  %v311 = vpop.f32.mrf.mxu0
  %v312 = vadd.f32 0.0, %v311
  %313 = vdwg.mxu0
  %v314 = vadd.f32 %v293, %v312
  %315 = vst.msk [vmem:[%s13] sm:$0xff] %vm140, %v314
  %v316 = vld [vmem:[%s14] sm:$0xff]
  %v317 = vsel %vm267, %v265, 0.0
  %318 = vadd.xlane.f32.xlu0 %v317
  %v319 = vpop.xlane.xlu0 %318
  %v320 = vadd.f32 %v316, %v319
  %vm321 = vcmask 7168
  %322 = vst.msk [vmem:[%s14] sm:$0xff] %vm321, %v320
  // Predicated region
  $region46: #{_update_node_impl.5} parent=0 // pred_check
    _
  $region47: #{_update_node_impl.5} parent=0 // pred_check_branch
    %324 = sbr.rel (0) target = $region49
  $region48: #{_update_node_impl.5} parent=0 // pred_region
    _
  $region49: #{_update_node_impl.5} parent=0 // pred_fallthru
    _
  // Predicated region
  $region50: #{_update_node_impl.5} parent=0 // pred_check
    _
  $region51: #{_update_node_impl.5} parent=0 // pred_check_branch
    %326 = sbr.rel (0) target = $region53
  $region52: #{_update_node_impl.5} parent=0 // pred_region
    _
  $region53: #{_update_node_impl.5} parent=0 // pred_fallthru
    _
  // Predicated region
  $region54: #{_update_node_impl.5} parent=0 // pred_check
    _
  $region55: #{_update_node_impl.5} parent=0 // pred_check_branch
    %328 = sbr.rel (0) target = $region57
  $region56: #{_update_node_impl.5} parent=0 // pred_region
    _
  $region57: #{_update_node_impl.5} parent=0 // pred_fallthru
    _
  // Predicated region
  $region58: #{_update_node_impl.5} parent=0 // pred_check
    _
  $region59: #{_update_node_impl.5} parent=0 // pred_check_branch
    %330 = sbr.rel (0) target = $region61
  $region60: #{_update_node_impl.5} parent=0 // pred_region
    _
  $region61: #{_update_node_impl.5} parent=0 // pred_fallthru
    _
  // Predicated region
  $region62: #{_update_node_impl.5} parent=0 // pred_check
    _
  $region63: #{_update_node_impl.5} parent=0 // pred_check_branch
    %332 = sbr.rel (0) target = $region65
  $region64: #{_update_node_impl.5} parent=0 // pred_region
    _
  $region65: #{_update_node_impl.5} parent=0 // pred_fallthru
    _
  // Predicated region
  $region66: #{_update_node_impl.5} parent=0 // pred_check
    _
  $region67: #{_update_node_impl.5} parent=0 // pred_check_branch
    %334 = sbr.rel (0) target = $region69
  $region68: #{_update_node_impl.5} parent=0 // pred_region
    _
  $region69: #{_update_node_impl.5} parent=0 // pred_fallthru
    _
  // Predicated region
  $region70: #{_update_node_impl.5} parent=0 // pred_check
    _
  $region71: #{_update_node_impl.5} parent=0 // pred_check_branch
    %336 = sbr.rel (0) target = $region73
  $region72: #{_update_node_impl.5} parent=0 // pred_region
    _
  $region73: #{_update_node_impl.5} parent=0 // pred_fallthru
    _
  // Predicated region
  $region74: #{_update_node_impl.5} parent=0 // pred_check
    _
  $region75: #{_update_node_impl.5} parent=0 // pred_check_branch
    %338 = sbr.rel (0) target = $region77
  $region76: #{_update_node_impl.5} parent=0 // pred_region
    _
  $region77: #{_update_node_impl.5} parent=0 // pred_fallthru
    _
  // Predicated region
  $region78: #{_update_node_impl.5} parent=0 // pred_check
    _
  $region79: #{_update_node_impl.5} parent=0 // pred_check_branch
    %340 = sbr.rel (0) target = $region81
  $region80: #{_update_node_impl.5} parent=0 // pred_region
    _
  $region81: #{_update_node_impl.5} parent=0 // pred_fallthru
    _
  // Predicated region
  $region82: #{_update_node_impl.5} parent=0 // pred_check
    _
  $region83: #{_update_node_impl.5} parent=0 // pred_check_branch
    %342 = sbr.rel (0) target = $region85
  $region84: #{_update_node_impl.5} parent=0 // pred_region
    _
  $region85: #{_update_node_impl.5} parent=0 // pred_fallthru
    _

// kernel: _update_node_impl.7
$region0: #{_update_node_impl.7}
  #allocation0 [shape = 'u32[]', space=smem, size = 0x4, offset = 0x4, fixed_abs, tag = 'smem constant byte address 0x4 - core index']
  #allocation1 [shape = 'u32[72,128]{1,0:T(1,128)}', space=vmem, size = 0x9000, scoped, tag = 'internal scratch']
  %s0 = inlined_call_operand.vmem [shape: f32[16,32], index: 0, kind: input, shape index: {}]
  %s1 = inlined_call_operand.vmem [shape: s32[16,1], index: 1, kind: input, shape index: {}]
  %s2 = inlined_call_operand.vmem [shape: f32[1,32], index: 2, kind: input, shape index: {}]
  %s3 = inlined_call_operand.vmem [shape: f32[1,32], index: 3, kind: input, shape index: {}]
  %s4 = inlined_call_operand.vmem [shape: f32[1,32], index: 4, kind: input, shape index: {}]
  %s5 = inlined_call_operand.vmem [shape: f32[1,32], index: 5, kind: input, shape index: {}]
  %s6 = inlined_call_operand.vmem [shape: bf16[32,128], index: 6, kind: input, shape index: {}]
  %s7 = inlined_call_operand.vmem [shape: f32[1,128], index: 7, kind: input, shape index: {}]
  %s8 = inlined_call_operand.vmem [shape: bf16[128,32], index: 8, kind: input, shape index: {}]
  %s9 = inlined_call_operand.vmem [shape: f32[1,32], index: 9, kind: input, shape index: {}]
  %s10 = inlined_call_operand.vmem [shape: f32[1,32], index: 10, kind: input, shape index: {}]
  %s11 = inlined_call_operand.vmem [shape: f32[1,32], index: 11, kind: input, shape index: {}]
  %s12 = inlined_call_operand.vmem [shape: f32[8,32], index: 12, kind: input, shape index: {}]
  %s13 = inlined_call_operand.hbm [shape: f32[16,32], index: 13, kind: output, shape index: {}]
  %s14 = sld [smem:[#allocation0]]
  $region62: #{_update_node_impl.7} parent=0
    _
  %s16 = ssub.s32 1, %s14
  %s17 = scalar_select 0, %s16, %s14
  $region1: #{_update_node_impl.7} parent=0
    #allocation2 [shape = 'u8[8192]{0}', space=vmem, size = 0x2000, scoped, tag = 'output window, operand 0, single buffered']
    #allocation3 [shape = 's32[1]{0}', space=sflag, size = 0x4, scoped, tag = 'scoped memory for _update_node_impl.7']
    %18 = vsyncpa [#allocation3], 0
    // Predicated region
    $region2: #{_update_node_impl.7} parent=1 // pred_check
      _
    $region3: #{_update_node_impl.7} parent=1 // pred_check_branch
      %20 = sbr.rel (0) target = $region5
    $region4: #{_update_node_impl.7} parent=1 // pred_region
      _
    $region5: #{_update_node_impl.7} parent=1 // pred_fallthru
      _
    // Predicated region
    $region6: #{_update_node_impl.7} parent=1 // pred_check
      _
    $region7: #{_update_node_impl.7} parent=1 // pred_check_branch
      %22 = sbr.rel (0) target = $region9
    $region8: #{_update_node_impl.7} parent=1 // pred_region
      _
    $region9: #{_update_node_impl.7} parent=1 // pred_fallthru
      _
    // Predicated region
    $region10: #{_update_node_impl.7} parent=1 // pred_check
      _
    $region11: #{_update_node_impl.7} parent=1 // pred_check_branch
      %24 = sbr.rel (0) target = $region13
    $region12: #{_update_node_impl.7} parent=1 // pred_region
      _
    $region13: #{_update_node_impl.7} parent=1 // pred_fallthru
      _
    // Predicated region
    $region14: #{_update_node_impl.7} parent=1 // pred_check
      _
    $region15: #{_update_node_impl.7} parent=1 // pred_check_branch
      %26 = sbr.rel (0) target = $region17
    $region16: #{_update_node_impl.7} parent=1 // pred_region
      _
    $region17: #{_update_node_impl.7} parent=1 // pred_fallthru
      _
    // Predicated region
    $region18: #{_update_node_impl.7} parent=1 // pred_check
      _
    $region19: #{_update_node_impl.7} parent=1 // pred_check_branch
      %28 = sbr.rel (0) target = $region21
    $region20: #{_update_node_impl.7} parent=1 // pred_region
      _
    $region21: #{_update_node_impl.7} parent=1 // pred_fallthru
      _
    // Predicated region
    $region22: #{_update_node_impl.7} parent=1 // pred_check
      _
    $region23: #{_update_node_impl.7} parent=1 // pred_check_branch
      %30 = sbr.rel (0) target = $region25
    $region24: #{_update_node_impl.7} parent=1 // pred_region
      _
    $region25: #{_update_node_impl.7} parent=1 // pred_fallthru
      _
    // Predicated region
    $region26: #{_update_node_impl.7} parent=1 // pred_check
      _
    $region27: #{_update_node_impl.7} parent=1 // pred_check_branch
      %32 = sbr.rel (0) target = $region29
    $region28: #{_update_node_impl.7} parent=1 // pred_region
      _
    $region29: #{_update_node_impl.7} parent=1 // pred_fallthru
      _
    // Predicated region
    $region30: #{_update_node_impl.7} parent=1 // pred_check
      _
    $region31: #{_update_node_impl.7} parent=1 // pred_check_branch
      %34 = sbr.rel (0) target = $region33
    $region32: #{_update_node_impl.7} parent=1 // pred_region
      _
    $region33: #{_update_node_impl.7} parent=1 // pred_fallthru
      _
    // Predicated region
    $region34: #{_update_node_impl.7} parent=1 // pred_check
      _
    $region35: #{_update_node_impl.7} parent=1 // pred_check_branch
      %36 = sbr.rel (0) target = $region37
    $region36: #{_update_node_impl.7} parent=1 // pred_region
      _
    $region37: #{_update_node_impl.7} parent=1 // pred_fallthru
      _
    // Predicated region
    $region38: #{_update_node_impl.7} parent=1 // pred_check
      _
    $region39: #{_update_node_impl.7} parent=1 // pred_check_branch
      %38 = sbr.rel (0) target = $region41
    $region40: #{_update_node_impl.7} parent=1 // pred_region
      _
    $region41: #{_update_node_impl.7} parent=1 // pred_fallthru
      _
    // Predicated region
    $region42: #{_update_node_impl.7} parent=1 // pred_check
      _
    $region43: #{_update_node_impl.7} parent=1 // pred_check_branch
      %40 = sbr.rel (0) target = $region45
    $region44: #{_update_node_impl.7} parent=1 // pred_region
      _
    $region45: #{_update_node_impl.7} parent=1 // pred_fallthru
      _
    // Predicated region
    $region46: #{_update_node_impl.7} parent=1 // pred_check
      _
    $region47: #{_update_node_impl.7} parent=1 // pred_check_branch
      %42 = sbr.rel (0) target = $region49
    $region48: #{_update_node_impl.7} parent=1 // pred_region
      _
    $region49: #{_update_node_impl.7} parent=1 // pred_fallthru
      _
    // Predicated region
    $region50: #{_update_node_impl.7} parent=1 // pred_check
      _
    $region51: #{_update_node_impl.7} parent=1 // pred_check_branch
      %44 = sbr.rel (0) target = $region53
    $region52: #{_update_node_impl.7} parent=1 // pred_region
      _
    $region53: #{_update_node_impl.7} parent=1 // pred_fallthru
      _
    %v46 = vld [vmem:[%s0] sm:$0xff]
    %v47 = vld [vmem:[%s0 + $0x8] sm:$0xff]
    %v48 = vld [vmem:[%s2] sm:$0x1]
    %v49 = vld [vmem:[%s3] sm:$0x1]
    %v50 = vld [vmem:[%s4] sm:$0x1]
    %v51 = vld [vmem:[%s5] sm:$0x1]
    %v52 = vld [vmem:[%s6] sm:$0xf]
    %v53 = vld [vmem:[%s6 + $0x4] sm:$0xf]
    %v54 = vld [vmem:[%s6 + $0x8] sm:$0xf]
    %v55 = vld [vmem:[%s6 + $0xc] sm:$0xf]
    %v56 = vld [vmem:[%s7] sm:$0x1]
    %v57 = vld [vmem:[%s8] sm:$0xf]
    %v58 = vld [vmem:[%s8 + $0x4] sm:$0xf]
    %v59 = vld [vmem:[%s8 + $0x8] sm:$0xf]
    %v60 = vld [vmem:[%s8 + $0xc] sm:$0xf]
    %v61 = vld [vmem:[%s8 + $0x10] sm:$0xf]
    %v62 = vld [vmem:[%s8 + $0x14] sm:$0xf]
    %v63 = vld [vmem:[%s8 + $0x18] sm:$0xf]
    %v64 = vld [vmem:[%s8 + $0x1c] sm:$0xf]
    %v65 = vld [vmem:[%s8 + $0x20] sm:$0xf]
    %v66 = vld [vmem:[%s8 + $0x24] sm:$0xf]
    %v67 = vld [vmem:[%s8 + $0x28] sm:$0xf]
    %v68 = vld [vmem:[%s8 + $0x2c] sm:$0xf]
    %v69 = vld [vmem:[%s8 + $0x30] sm:$0xf]
    %v70 = vld [vmem:[%s8 + $0x34] sm:$0xf]
    %v71 = vld [vmem:[%s8 + $0x38] sm:$0xf]
    %v72 = vld [vmem:[%s8 + $0x3c] sm:$0xf]
    %v73 = vld [vmem:[%s9] sm:$0x1]
    %v74 = vmul.f32 %v48, 0.0625
    %v75 = vmul.f32 %v49, 0.0625
    %v76 = vmul.f32 %v74, %v74
    %v77 = vsub.f32 %v75, %v76
    %v78 = vadd.f32 %v77, 1e-05
    %v79 = vrsqrt.pop %v78
    %v80 = vmul.f32 %v79, %v78
    %v81 = vmul.f32 %v80, %v79
    %v82 = vmul.f32 0.5, %v81
    %v83 = vsub.f32 1.5, %v82
    %v84 = vmul.f32 %v79, %v83
    %vm85 = vweird.f32 %v78
    %vm86 = vweird.f32 %v79
    %vm87 = vmor %vm85, %vm86
    %v88 = vsel %vm87, %v79, %v84
    %v89 = vmul.f32 %v50, %v88
    %v90 = vmul.f32 %v74, %v89
    %v91 = vsub.f32 %v51, %v90
    %v93 = vperm.slane %v89, 0
    %v95 = vmul.f32 %v46, %v93
    %v96 = vmul.f32 %v47, %v93
    %v98 = vperm.slane %v91, 0
    %v100 = vadd.f32 %v95, %v98
    %v101 = vadd.f32 %v96, %v98
    %v102 = vpack.c.bf16 %v101, %v100
    %v104 = vperm.slane %v56, 0
    %v110 = vunpack.c.l.b16 %v52
    %v111 = vunpack.c.l.b16 %v53
    %v112 = vunpack.c.l.b16 %v54
    %v113 = vunpack.c.l.b16 %v55
    %v114 = vpack.c.b16 %v111, %v110
    %v115 = vpack.c.b16 %v113, %v112
    %vm118 = vcmask 261120
    %v120 = vsel %vm118, %v102, 0
    %122 = vmatpush.bf16.msra.mxu0 0
    %123 = vmatpush.bf16.msra.mxu0 0
    %124 = vmatpush.bf16.msra.mxu0 0
    %125 = vmatpush.bf16.msra.mxu0 0
    %126 = vmatpush.bf16.msra.mxu0 0
    %127 = vmatpush.bf16.msra.mxu0 0
    %128 = vmatpush.bf16.msra.mxu0 %v115
    %129 = vmatpush.bf16.msra.mxu0 %v114
    %130 = vmatmul.bf16.gmra.mxu0 %v120
    %v131 = vpop.f32.mrf.mxu0
    %v132 = vadd.f32 %v104, %v131
    %v133 = vpop.f32.mrf.mxu0
    %v134 = vadd.f32 %v104, %v133
    %135 = vdwg.mxu0
    %v136 = vmax.f32 %v132, 0.0
    %v137 = vmax.f32 %v134, 0.0
    %v138 = vpack.c.bf16 %v137, %v136
    %v140 = vperm.slane %v73, 0
    %v158 = vunpack.c.l.b16 %v57
    %v159 = vunpack.c.l.b16 %v58
    %v160 = vunpack.c.l.b16 %v59
    %v161 = vunpack.c.l.b16 %v60
    %v162 = vunpack.c.l.b16 %v61
    %v163 = vunpack.c.l.b16 %v62
    %v164 = vunpack.c.l.b16 %v63
    %v165 = vunpack.c.l.b16 %v64
    %v166 = vunpack.c.l.b16 %v65
    %v167 = vunpack.c.l.b16 %v66
    %v168 = vunpack.c.l.b16 %v67
    %v169 = vunpack.c.l.b16 %v68
    %v170 = vunpack.c.l.b16 %v69
    %v171 = vunpack.c.l.b16 %v70
    %v172 = vunpack.c.l.b16 %v71
    %v173 = vunpack.c.l.b16 %v72
    %v174 = vpack.c.b16 %v159, %v158
    %v175 = vpack.c.b16 %v161, %v160
    %v176 = vpack.c.b16 %v163, %v162
    %v177 = vpack.c.b16 %v165, %v164
    %v178 = vpack.c.b16 %v167, %v166
    %v179 = vpack.c.b16 %v169, %v168
    %v180 = vpack.c.b16 %v171, %v170
    %v181 = vpack.c.b16 %v173, %v172
    %190 = vmatpush.bf16.msra.mxu0 %v181
    %191 = vmatpush.bf16.msra.mxu0 %v180
    %192 = vmatpush.bf16.msra.mxu0 %v179
    %193 = vmatpush.bf16.msra.mxu0 %v178
    %194 = vmatpush.bf16.msra.mxu0 %v177
    %195 = vmatpush.bf16.msra.mxu0 %v176
    %196 = vmatpush.bf16.msra.mxu0 %v175
    %197 = vmatpush.bf16.msra.mxu0 %v174
    %198 = vmatmul.bf16.gmra.mxu0 %v138
    %v199 = vpop.f32.mrf.mxu0
    %v200 = vadd.f32 %v140, %v199
    %v201 = vpop.f32.mrf.mxu0
    %v202 = vadd.f32 %v140, %v201
    %203 = vdwg.mxu0
    %v204 = vld [vmem:[%s10] sm:$0x1]
    %v206 = vperm.slane %v204, 0
    %v208 = vmul.f32 %v200, %v206
    %v209 = vmul.f32 %v202, %v206
    %v210 = vadd.f32 %v46, %v208
    %v211 = vadd.f32 %v47, %v209
    %v212 = vld [vmem:[%s11] sm:$0x1]
    %v214 = vperm.slane %v212, 0
    %v216 = vadd.f32 %v210, %v214
    %v217 = vadd.f32 %v211, %v214
    %v218 = vld [vmem:[%s1] sm:$0xff]
    %v219 = vld [vmem:[%s1 + $0x8] sm:$0xff]
    %v220 = vlaneseq
    %v221 = vand.u32 %v220, 127
    %222 = vset.pattern.permute.xlu0 0
    %223 = vperm.xlu0 %222, %v218
    %v224 = vpop.permute.xlu0 %223
    %225 = vset.pattern.permute.xlu0 0
    %226 = vperm.xlu0 %225, %v219
    %v227 = vpop.permute.xlu0 %226
    %vm228 = vcmp.eq.s32.totalorder %v224, %v221
    %vm229 = vcmp.eq.s32.totalorder %v227, %v221
    %v230 = vsel %vm228, 1, 0
    %v231 = vsel %vm229, 1, 0
    %v232 = vcvt.s32.f32 %v230
    %v233 = vcvt.s32.f32 %v231
    %v234 = vld [vmem:[%s12] sm:$0xff]
    %vm235 = vcmask 64512
    %v237 = vsel %vm235, %v232, 0
    %v240 = vsel %vm235, %v233, 0
    %242 = vmatpush.msra.mxu0 0.0
    %243 = vmatpush.msra.mxu0 0.0
    %244 = vmatpush.msra.mxu0 0.0
    %245 = vmatpush.msra.mxu0 0.0
    %246 = vmatpush.msra.mxu0 0.0
    %247 = vmatpush.msra.mxu0 0.0
    %248 = vmatpush.msra.mxu0 0.0
    %249 = vmatpush.msra.mxu0 0.0
    %250 = vmatpush.msra.mxu0 0.0
    %251 = vmatpush.msra.mxu0 0.0
    %252 = vmatpush.msra.mxu0 0.0
    %253 = vmatpush.msra.mxu0 0.0
    %254 = vmatpush.msra.mxu0 0.0
    %255 = vmatpush.msra.mxu0 0.0
    %256 = vmatpush.msra.mxu0 0.0
    %257 = vmatpush.msra.mxu0 %v234
    %258 = vmatmul.f32.gmra.mxu0 %v237
    %v259 = vpop.f32.mrf.mxu0
    %v260 = vadd.f32 0.0, %v259
    %261 = vmatmul.f32.gmra.mxu0 %v240
    %v262 = vpop.f32.mrf.mxu0
    %v263 = vadd.f32 0.0, %v262
    %264 = vdwg.mxu0
    %v265 = vmul.f32 %v216, %v260
    %v266 = vmul.f32 %v217, %v263
    %267 = vst.msk [vmem:[#allocation2] sm:$0xff] %vm118, %v265
    %268 = vst.msk [vmem:[#allocation2 + $0x8] sm:$0xff] %vm118, %v266
    // Predicated region
    $region54: #{_update_node_impl.7} parent=1 // pred_check
      _
    $region55: #{_update_node_impl.7} parent=1 // pred_check_branch
      %270 = sbr.rel (0) target = $region57
    $region56: #{_update_node_impl.7} parent=1 // pred_region
      %272 = vsyncadd [#allocation3], 0
      %s273 = sshll.u32 [#allocation2], 4
      %s274 = int_to_ptr.vmem [resolvable:$true] %s273
      %s275 = sshll.u32 %s13, 4
      %s276 = int_to_ptr.hbm [resolvable:$true] %s275
      %281 = dma.vmem_to_hbm [thread:$0]  %s274, 256, %s276, [#allocation3], 128, 128, 8
    $region57: #{_update_node_impl.7} parent=1 // pred_fallthru
      _
    // Predicated region
    $region58: #{_update_node_impl.7} parent=1 // pred_check
      _
    $region59: #{_update_node_impl.7} parent=1 // pred_check_branch
      %283 = sbr.rel (0) target = $region61
    $region60: #{_update_node_impl.7} parent=1 // pred_region
      %285 = dma.done [#allocation3], 256
    $region61: #{_update_node_impl.7} parent=1 // pred_fallthru
      _
    %286 = vsyncpa [#allocation3], 1

</llo_original>
